<compile_context>
chip_gen: v5e
topology: v5e:2x2
jax: 0.10.0
libtpu: 0.0.40
codegen_flags: <defaults>
</compile_context>

<pallas_src>
import jax
import jax.numpy as jnp
from jax.experimental import pallas as pl
from jax.experimental.pallas import tpu as pltpu


# ----------------------------------------------------------------------------
# Helpers
# ----------------------------------------------------------------------------
def _round_up(x, m):
    return ((x + m - 1) // m) * m


def _pick_tile(dim, pref, align):
    """Largest tile <= pref that is a multiple of `align` and divides `dim`.
    With padded dims (multiples of 8 / 128) this never hits the full-dim
    fallback for realistic sizes."""
    if dim <= pref:
        return dim
    t = (pref // align) * align
    while t >= align:
        if dim % t == 0:
            return t
        t -= align
    return dim


def _vmem_capacity_bytes():
    try:
        return int(pltpu.get_tpu_info().vmem_capacity_bytes)
    except Exception:
        return 128 << 20  # v5e/v6e physical VMEM


def _single_buffered_spec(block_shape, index_map):
    """Resident (constant-index) input: single-buffer it to save VMEM; fall
    back to a default BlockSpec if this JAX lacks pipeline_mode/Buffered."""
    try:
        return pl.BlockSpec(block_shape, index_map, pipeline_mode=pl.Buffered(1))
    except (TypeError, AttributeError):
        return pl.BlockSpec(block_shape, index_map)


def _reorder_pad_gates(w, H, Hp):
    """Last axis is 4H in PyTorch gate order [i, f, g, o].  Zero-pad each gate
    to Hp and repack as [i | f | o | g] (contiguous sigmoid block, tanh last)."""
    i, f, g, o = jnp.split(w, 4, axis=-1)
    pad = [(0, 0)] * w.ndim
    pad[-1] = (0, Hp - H)
    p = lambda a: jnp.pad(a, pad)
    return jnp.concatenate([p(i), p(f), p(o), p(g)], axis=-1)


# ----------------------------------------------------------------------------
# Tiled matmul + bias kernel:  (M, K) @ (K, N) + (1, N) -> (M, N) f32
# Weight/N axis is the OUTER grid axis so each (K, tn) weight tile is DMAed
# once (weights dominate HBM bytes for the FC head with a large vocab).
# ----------------------------------------------------------------------------
def _matmul_bias_kernel(x_ref, w_ref, b_ref, o_ref):
    o_ref[...] = (jnp.dot(x_ref[...].astype(w_ref.dtype), w_ref[...],
                          preferred_element_type=jnp.float32)
                  + b_ref[...]).astype(o_ref.dtype)


def matmul_bias(x2d, w_t, bias, *, tm_pref=256, tn_pref=512):
    M, K = x2d.shape
    _, N = w_t.shape
    tm = _pick_tile(M, tm_pref, 8)      # sublane-aligned row tiles
    tn = _pick_tile(N, tn_pref, 128)    # lane-dense (>=128) output tiles
    grid = (N // tn, M // tm)           # weight tile constant across inner axis

    bpe_w = w_t.dtype.itemsize
    vmem_est = 2 * (tm * K * 4 + K * tn * bpe_w + tm * tn * 4 + tn * 4) + (4 << 20)
    vmem_limit = int(min(min(64 << 20, _vmem_capacity_bytes()),
                         max(vmem_est, 32 << 20)))
    ce = pl.CostEstimate(flops=2 * M * N * K, transcendentals=0,
                         bytes_accessed=4 * M * K + bpe_w * K * N + 4 * (M * N + N))
    return pl.pallas_call(
        _matmul_bias_kernel,
        out_shape=jax.ShapeDtypeStruct((M, N), jnp.float32),
        grid_spec=pltpu.PrefetchScalarGridSpec(
            num_scalar_prefetch=0,
            grid=grid,
            in_specs=[
                pl.BlockSpec((tm, K), lambda j, i: (i, 0)),   # activations
                pl.BlockSpec((K, tn), lambda j, i: (0, j)),   # weights (stationary per j)
                pl.BlockSpec((1, tn), lambda j, i: (0, j)),   # bias
            ],
            out_specs=pl.BlockSpec((tm, tn), lambda j, i: (i, j)),
        ),
        compiler_params=pltpu.CompilerParams(
            dimension_semantics=("parallel", "parallel"),
            vmem_limit_bytes=vmem_limit),
        cost_estimate=ce,
    )(x2d, w_t, bias)


# ----------------------------------------------------------------------------
# Recurrent LSTM kernel.  gates_in = x @ W_ih^T + b is precomputed (packed as
# [i|f|o|g], each gate Hp wide).  The kernel does h_prev @ W_hh^T + gates[t]
# and the gate nonlinearities.  Grid = (batch tiles, sequence chunks); the time
# loop runs inside the kernel with h/c as fori_loop carries, persisting across
# chunks in VMEM scratch.
# ----------------------------------------------------------------------------
def _lstm_recurrent_kernel(gates_ref, whh_ref, h0_ref, c0_ref,
                           out_ref, hn_ref, cn_ref, h_scr, c_scr):
    chunk = pl.program_id(1)
    tc = gates_ref.shape[0]
    hdim = whh_ref.shape[0]

    @pl.when(chunk == 0)
    def _():
        h_scr[...] = h0_ref[...]
        c_scr[...] = c0_ref[...]

    whh = whh_ref[...]            # resident recurrent weight (single-buffered)
    h_carry = h_scr[...]
    c_carry = c_scr[...]

    def step(t, carry):
        h_prev, c_prev = carry
        gates = gates_ref[t] + jnp.dot(h_prev.astype(whh.dtype), whh,
                                       preferred_element_type=jnp.float32)
        # Packed gate order [i | f | o | g]; one sigmoid region + one tanh.
        ifo = jax.nn.sigmoid(gates[:, :3 * hdim])
        g_g = jnp.tanh(gates[:, 3 * hdim:])
        i_g = ifo[:, :hdim]
        f_g = ifo[:, hdim:2 * hdim]
        o_g = ifo[:, 2 * hdim:]
        c_new = f_g * c_prev + i_g * g_g
        h_new = o_g * jnp.tanh(c_new)
        out_ref[t] = h_new.astype(out_ref.dtype)
        return h_new, c_new

    h_last, c_last = jax.lax.fori_loop(0, tc, step, (h_carry, c_carry),
                                       unroll=min(tc, 8))

    h_scr[...] = h_last
    c_scr[...] = c_last
    # Write finals every chunk (cheap; avoids relying on deferred writeback).
    hn_ref[...] = h_last.astype(hn_ref.dtype)
    cn_ref[...] = c_last.astype(cn_ref.dtype)


def lstm_recurrent(gates_in, whh_t, h0, c0):
    """gates_in: (S, B, 4Hp) time-major precomputed x@W_ih^T + b (packed).
    whh_t: (Hp, 4Hp).  Returns (out (S,B,Hp), hN (B,Hp), cN (B,Hp))."""
    S, B, G = gates_in.shape
    Hp = whh_t.shape[0]

    # Batch-parallel tile (v7x megacore); tiles must be 8-multiples or == B.
    tb = B // 2 if (B % 16 == 0) else B

    # VMEM-budgeted time chunk: double-buffered gates+out per timestep,
    # single-buffered resident W_hh + small carries.
    capacity = _vmem_capacity_bytes()
    budget = max(8 << 20, min(32 << 20, capacity // 4))
    w_bytes = whh_t.size * whh_t.dtype.itemsize
    resident = w_bytes + 10 * tb * Hp * 4          # h0,c0 (x2 buf), scratch, finals
    per_step = 2 * (tb * G + tb * Hp) * 4
    tc_max = max(1, (budget - resident) // per_step) if budget > resident else 1
    TC = min(S, int(tc_max), 256)
    while S % TC != 0:
        TC -= 1
    n_chunks = S // TC

    vmem_limit = int(min(min(64 << 20, capacity),
                         max(resident + TC * per_step + (4 << 20), 32 << 20)))
    ce = pl.CostEstimate(
        flops=2 * S * B * Hp * G + 10 * S * B * G,
        transcendentals=5 * S * B * Hp,
        bytes_accessed=4 * (S * B * G + S * B * Hp + 6 * B * Hp) + w_bytes)

    return pl.pallas_call(
        _lstm_recurrent_kernel,
        out_shape=(
            jax.ShapeDtypeStruct((S, B, Hp), jnp.float32),
            jax.ShapeDtypeStruct((B, Hp), jnp.float32),
            jax.ShapeDtypeStruct((B, Hp), jnp.float32),
        ),
        grid_spec=pltpu.PrefetchScalarGridSpec(
            num_scalar_prefetch=0,
            grid=(B // tb, n_chunks),
            in_specs=[
                pl.BlockSpec((TC, tb, G), lambda b, c: (c, b, 0)),      # gate inputs
                _single_buffered_spec((Hp, G), lambda b, c: (0, 0)),    # W_hh^T (resident)
                pl.BlockSpec((tb, Hp), lambda b, c: (b, 0)),            # h0
                pl.BlockSpec((tb, Hp), lambda b, c: (b, 0)),            # c0
            ],
            out_specs=[
                pl.BlockSpec((TC, tb, Hp), lambda b, c: (c, b, 0)),     # hidden seq
                pl.BlockSpec((tb, Hp), lambda b, c: (b, 0)),            # final h
                pl.BlockSpec((tb, Hp), lambda b, c: (b, 0)),            # final c
            ],
            scratch_shapes=[
                pltpu.VMEM((tb, Hp), jnp.float32),                      # h carry
                pltpu.VMEM((tb, Hp), jnp.float32),                      # c carry
            ],
        ),
        compiler_params=pltpu.CompilerParams(
            dimension_semantics=("parallel", "arbitrary"),
            vmem_limit_bytes=vmem_limit),
        cost_estimate=ce,
    )(gates_in, whh_t, h0, c0)


# ----------------------------------------------------------------------------
# PoemRNN forward (kernel path)
# ----------------------------------------------------------------------------
def poem_rnn_forward(params, x_ids, hidden=None):
    """
    x_ids : (B, S) int32 token indices.
    hidden: optional ((L,B,H), (L,B,H)).
    Returns logits (B, S, V) and new hidden ((L,B,H), (L,B,H)).
    """
    kp = params["kernel"]
    B, S = x_ids.shape
    L = len(kp["lstm"])
    H = params["ref"]["lstm"][0]["whh_t"].shape[0]
    V = params["ref"]["fc_b"].shape[1]
    Hp = kp["lstm"][0]["whh_t"].shape[0]
    Vp = kp["fc_w_t"].shape[1]
    Bp = _round_up(B, 8)

    if hidden is None:
        h_all = jnp.zeros((L, Bp, Hp), jnp.float32)
        c_all = jnp.zeros((L, Bp, Hp), jnp.float32)
    else:
        h_in, c_in = hidden
        h_all = jnp.zeros((L, Bp, Hp), jnp.float32).at[:, :B, :H].set(h_in)
        c_all = jnp.zeros((L, Bp, Hp), jnp.float32).at[:, :B, :H].set(c_in)

    # Pad token ids along batch (dummy rows are sliced away at the end), then
    # layer-0 fused gather: rows of (embed @ W_ih0^T + b0), packed [i|f|o|g],
    # directly in TIME-MAJOR order -> (S, Bp, 4Hp).
    ids_p = jnp.zeros((Bp, S), x_ids.dtype).at[:B, :].set(x_ids)
    gates_in = jnp.take(kp["embed_gates0"], ids_p.T, axis=0)

    h_outs, c_outs = [], []
    layer_out = None
    for l in range(L):
        lw = kp["lstm"][l]
        if l > 0:
            # Hoisted input projection for this layer: one big MXU matmul.
            gates_in = matmul_bias(layer_out.reshape(S * Bp, Hp),
                                   lw["wih_t"], lw["bias"]).reshape(S, Bp, 4 * Hp)
        layer_out, hN, cN = lstm_recurrent(gates_in, lw["whh_t"],
                                           h_all[l], c_all[l])
        h_outs.append(hN[:B, :H])
        c_outs.append(cN[:B, :H])

    # Small (S,Bp,Hp) -> (Bp,S,Hp) transpose; FC emits batch-first logits.
    out_bsh = jnp.transpose(layer_out, (1, 0, 2))
    logits_p = matmul_bias(out_bsh.reshape(Bp * S, Hp),
                           kp["fc_w_t"], kp["fc_b"]).reshape(Bp, S, Vp)
    logits = logits_p[:B, :, :V]
    return logits, (jnp.stack(h_outs, 0), jnp.stack(c_outs, 0))


# ----------------------------------------------------------------------------
# Deterministic parameter construction (synthetic, not a checkpoint load).
# Logical ("ref") weights follow the PyTorch LSTM convention; kernel weights
# are gate-repacked [i|f|o|g], zero-padded to (Hp, 4Hp)/(Hp, Vp), optionally
# bf16 (recommended on v6e/v7x; keep f32 on v5e and for exactness checks).
# ----------------------------------------------------------------------------
def make_params(key, vocab_size, embed_size, hidden_size, num_layers,
                *, compute_dtype=jnp.float32):
    keys = jax.random.split(key, 2 + 4 * num_layers + 2)
    k_iter = iter(keys)
    scale = 1.0 / jnp.sqrt(hidden_size)

    H = hidden_size
    Hp = _round_up(H, 128)
    Vp = _round_up(vocab_size, 128)

    embed = jax.random.normal(next(k_iter), (vocab_size, embed_size),
                              jnp.float32) * 0.1

    ref_lstm, kern_lstm = [], []
    for l in range(num_layers):
        in_dim = embed_size if l == 0 else H
        w_ih = jax.random.uniform(next(k_iter), (4 * H, in_dim),
                                  jnp.float32, -scale, scale)
        w_hh = jax.random.uniform(next(k_iter), (4 * H, H),
                                  jnp.float32, -scale, scale)
        b_ih = jax.random.uniform(next(k_iter), (4 * H,),
                                  jnp.float32, -scale, scale)
        b_hh = jax.random.uniform(next(k_iter), (4 * H,),
                                  jnp.float32, -scale, scale)
        wih_t = w_ih.T                                   # (in_dim, 4H), [i,f,g,o]
        whh_t = w_hh.T                                   # (H, 4H)
        bias = (b_ih + b_hh).reshape(1, 4 * H)
        ref_lstm.append({"wih_t": wih_t, "whh_t": whh_t, "bias": bias})

        whh_k = _reorder_pad_gates(whh_t, H, Hp)               # (H, 4Hp)
        whh_k = jnp.pad(whh_k, ((0, Hp - H), (0, 0)))          # (Hp, 4Hp)
        bias_k = _reorder_pad_gates(bias, H, Hp)               # (1, 4Hp)
        entry = {"whh_t": whh_k.astype(compute_dtype), "bias": bias_k}
        if l > 0:
            wih_k = _reorder_pad_gates(wih_t, H, Hp)           # (H, 4Hp)
            wih_k = jnp.pad(wih_k, ((0, Hp - H), (0, 0)))      # (Hp, 4Hp)
            entry["wih_t"] = wih_k.astype(compute_dtype)
        kern_lstm.append(entry)

    # Layer-0 fusion: precomputed gate table (V, 4Hp), packed [i|f|o|g].
    gates0 = embed @ ref_lstm[0]["wih_t"] + ref_lstm[0]["bias"]     # (V, 4H)
    embed_gates0 = _reorder_pad_gates(gates0, H, Hp)                # (V, 4Hp)

    fc_w = jax.random.uniform(next(k_iter), (vocab_size, H),
                              jnp.float32, -scale, scale)
    fc_b = jax.random.uniform(next(k_iter), (vocab_size,),
                              jnp.float32, -scale, scale)
    fc_w_k = jnp.pad(fc_w.T, ((0, Hp - H), (0, Vp - vocab_size))).astype(compute_dtype)
    fc_b_k = jnp.pad(fc_b.reshape(1, vocab_size), ((0, 0), (0, Vp - vocab_size)))

    return {
        "ref": {"embed": embed, "lstm": ref_lstm,
                "fc_w_t": fc_w.T, "fc_b": fc_b.reshape(1, vocab_size)},
        "kernel": {"embed_gates0": embed_gates0, "lstm": kern_lstm,
                   "fc_w_t": fc_w_k, "fc_b": fc_b_k},
    }


# ----------------------------------------------------------------------------
# Pure-JAX reference (PyTorch LSTM semantics, gate order [i, f, g, o]).
# ----------------------------------------------------------------------------
def poem_rnn_reference(params, x_ids, hidden=None):
    rp = params["ref"]
    B, S = x_ids.shape
    L = len(rp["lstm"])
    H = rp["lstm"][0]["whh_t"].shape[0]
    emb = jnp.take(rp["embed"], x_ids, axis=0)
    x_seq = jnp.transpose(emb, (1, 0, 2))
    if hidden is None:
        h_all = jnp.zeros((L, B, H), jnp.float32)
        c_all = jnp.zeros((L, B, H), jnp.float32)
    else:
        h_all, c_all = hidden

    def layer(x_seq, wih_t, whh_t, bias, h0, c0):
        def step(carry, x_t):
            h, c = carry
            g = x_t @ wih_t + h @ whh_t + bias
            i, f, gg, o = jnp.split(g, 4, axis=-1)
            c = jax.nn.sigmoid(f) * c + jax.nn.sigmoid(i) * jnp.tanh(gg)
            h = jax.nn.sigmoid(o) * jnp.tanh(c)
            return (h, c), h
        (hN, cN), out = jax.lax.scan(step, (h0, c0), x_seq)
        return out, hN, cN

    layer_in = x_seq
    h_outs, c_outs = [], []
    for l in range(L):
        lw = rp["lstm"][l]
        layer_in, hN, cN = layer(layer_in, lw["wih_t"], lw["whh_t"], lw["bias"],
                                 h_all[l], c_all[l])
        h_outs.append(hN)
        c_outs.append(cN)
    out_bsh = jnp.transpose(layer_in, (1, 0, 2))
    logits = out_bsh @ rp["fc_w_t"] + rp["fc_b"]
    return logits, (jnp.stack(h_outs, 0), jnp.stack(c_outs, 0))


if __name__ == "__main__":
    VOCAB, EMBED, HIDDEN, LAYERS = 64, 32, 32, 2
    BATCH, SEQ = 2, 8

    key = jax.random.PRNGKey(0)
    k_params, k_x = jax.random.split(key)
    # compute_dtype=jnp.bfloat16 recommended on v6e/v7x; f32 here for exactness.
    params = make_params(k_params, VOCAB, EMBED, HIDDEN, LAYERS,
                         compute_dtype=jnp.float32)
    x_ids = jax.random.randint(k_x, (BATCH, SEQ), 0, VOCAB, dtype=jnp.int32)

    fwd = jax.jit(poem_rnn_forward)
    logits, (h, c) = fwd(params, x_ids)
    logits = jax.block_until_ready(logits)
    h = jax.block_until_ready(h)
    c = jax.block_until_ready(c)

    # correctness check against pure-JAX reference
    ref_logits, (ref_h, ref_c) = poem_rnn_reference(params, x_ids, hidden=None)
    assert logits.shape == (BATCH, SEQ, VOCAB)
    assert h.shape == (LAYERS, BATCH, HIDDEN) and c.shape == (LAYERS, BATCH, HIDDEN)
    assert jnp.allclose(logits, ref_logits, atol=1e-4)
    assert jnp.allclose(h, ref_h, atol=1e-4)
    assert jnp.allclose(c, ref_c, atol=1e-4)

    print("KERNEL_OK")
</pallas_src>

<mosaic_0001>
module attributes {stable_mosaic.version = 11 : i64} {
  func.func @_matmul_bias_kernel(%arg0: i32, %arg1: i32, %arg2: memref<64x128xf32, #tpu.memory_space<vmem>>, %arg3: memref<128x512xf32, #tpu.memory_space<vmem>>, %arg4: memref<1x512xf32, #tpu.memory_space<vmem>>, %arg5: memref<64x512xf32, #tpu.memory_space<vmem>>) attributes {dimension_semantics = [#tpu.dimension_semantics<parallel>, #tpu.dimension_semantics<parallel>], iteration_bounds = array<i64: 1, 1>, scalar_prefetch = 0 : i64, scratch_operands = 0 : i64, tpu.core_type = #tpu.core_type<tc>, window_params = [{transform_indices = @transform_0, window_bounds = array<i64: 64, 128>}, {transform_indices = @transform_1, window_bounds = array<i64: 128, 512>}, {transform_indices = @transform_2, window_bounds = array<i64: 1, 512>}, {transform_indices = @transform_3, window_bounds = array<i64: 64, 512>}]} {
    %c0 = arith.constant 0 : index
    %c0_0 = arith.constant 0 : index
    %0 = vector.load %arg2[%c0, %c0_0] : memref<64x128xf32, #tpu.memory_space<vmem>>, vector<64x128xf32>
    %c0_1 = arith.constant 0 : index
    %c0_2 = arith.constant 0 : index
    %1 = vector.load %arg3[%c0_1, %c0_2] : memref<128x512xf32, #tpu.memory_space<vmem>>, vector<128x512xf32>
    %cst = arith.constant dense<0.000000e+00> : vector<64x512xf32>
    %2 = tpu.matmul %0, %1, %cst {dimension_numbers = #tpu.dot_dimension_numbers<[1], [0], [0], [1], [0, 0, 1, 1], [], []>} : vector<64x128xf32>, vector<128x512xf32>, vector<64x512xf32> -> vector<64x512xf32>
    %c0_3 = arith.constant 0 : index
    %c0_4 = arith.constant 0 : index
    %3 = vector.load %arg4[%c0_3, %c0_4] : memref<1x512xf32, #tpu.memory_space<vmem>>, vector<1x512xf32>
    %4 = vector.broadcast %3 : vector<1x512xf32> to vector<64x512xf32>
    %5 = arith.addf %2, %4 : vector<64x512xf32>
    %c0_5 = arith.constant 0 : index
    %c0_6 = arith.constant 0 : index
    %6 = vector.load %arg5[%c0_5, %c0_6] : memref<64x512xf32, #tpu.memory_space<vmem>>, vector<64x512xf32>
    tpu.vector_store %arg5[%c0_5, %c0_6], %5 {strides = array<i32>} : memref<64x512xf32, #tpu.memory_space<vmem>>, vector<64x512xf32>,
    return
  }
  func.func @transform_0(%arg0: i32, %arg1: i32) -> (i32, i32) {
    %c0_i32 = arith.constant 0 : i32
    %c0_i32_0 = arith.constant 0 : i32
    return %arg1, %c0_i32 : i32, i32
  }
  func.func @transform_1(%arg0: i32, %arg1: i32) -> (i32, i32) {
    %c0_i32 = arith.constant 0 : i32
    %c0_i32_0 = arith.constant 0 : i32
    return %c0_i32, %arg0 : i32, i32
  }
  func.func @transform_2(%arg0: i32, %arg1: i32) -> (i32, i32) {
    %c0_i32 = arith.constant 0 : i32
    %c0_i32_0 = arith.constant 0 : i32
    return %c0_i32, %arg0 : i32, i32
  }
  func.func @transform_3(%arg0: i32, %arg1: i32) -> (i32, i32) {
    %c0_i32 = arith.constant 0 : i32
    return %arg1, %arg0 : i32, i32
  }
}

module attributes {stable_mosaic.version = 11 : i64} {
  func.func @_lstm_recurrent_kernel(%arg0: i32, %arg1: i32, %arg2: memref<8x8x512xf32, #tpu.memory_space<vmem>>, %arg3: memref<128x512xf32, #tpu.memory_space<vmem>>, %arg4: memref<8x128xf32, #tpu.memory_space<vmem>>, %arg5: memref<8x128xf32, #tpu.memory_space<vmem>>, %arg6: memref<8x8x128xf32, #tpu.memory_space<vmem>>, %arg7: memref<8x128xf32, #tpu.memory_space<vmem>>, %arg8: memref<8x128xf32, #tpu.memory_space<vmem>>, %arg9: memref<8x128xf32, #tpu.memory_space<vmem>>, %arg10: memref<8x128xf32, #tpu.memory_space<vmem>>) attributes {dimension_semantics = [#tpu.dimension_semantics<parallel>, #tpu.dimension_semantics<arbitrary>], iteration_bounds = array<i64: 1, 1>, scalar_prefetch = 0 : i64, scratch_operands = 2 : i64, tpu.core_type = #tpu.core_type<tc>, window_params = [{transform_indices = @transform_0, window_bounds = array<i64: 8, 8, 512>}, {pipeline_mode = #tpu.pipeline_mode<synchronous>, transform_indices = @transform_1, window_bounds = array<i64: 128, 512>}, {transform_indices = @transform_2, window_bounds = array<i64: 8, 128>}, {transform_indices = @transform_3, window_bounds = array<i64: 8, 128>}, {transform_indices = @transform_4, window_bounds = array<i64: 8, 8, 128>}, {transform_indices = @transform_5, window_bounds = array<i64: 8, 128>}, {transform_indices = @transform_6, window_bounds = array<i64: 8, 128>}]} {
    %c0_i32 = arith.constant 0 : i32
    %0 = arith.cmpi eq, %arg1, %c0_i32 : i32
    %1 = arith.extui %0 : i1 to i32
    %c0_i32_0 = arith.constant 0 : i32
    %2 = arith.cmpi ne, %1, %c0_i32_0 : i32
    scf.if %2 {
      %c0_62 = arith.constant 0 : index
      %c0_63 = arith.constant 0 : index
      %210 = vector.load %arg4[%c0_62, %c0_63] : memref<8x128xf32, #tpu.memory_space<vmem>>, vector<8x128xf32>
      %c0_64 = arith.constant 0 : index
      %c0_65 = arith.constant 0 : index
      %211 = vector.load %arg9[%c0_64, %c0_65] : memref<8x128xf32, #tpu.memory_space<vmem>>, vector<8x128xf32>
      tpu.vector_store %arg9[%c0_64, %c0_65], %210 {strides = array<i32>} : memref<8x128xf32, #tpu.memory_space<vmem>>, vector<8x128xf32>,
      %c0_66 = arith.constant 0 : index
      %c0_67 = arith.constant 0 : index
      %212 = vector.load %arg5[%c0_66, %c0_67] : memref<8x128xf32, #tpu.memory_space<vmem>>, vector<8x128xf32>
      %c0_68 = arith.constant 0 : index
      %c0_69 = arith.constant 0 : index
      %213 = vector.load %arg10[%c0_68, %c0_69] : memref<8x128xf32, #tpu.memory_space<vmem>>, vector<8x128xf32>
      tpu.vector_store %arg10[%c0_68, %c0_69], %212 {strides = array<i32>} : memref<8x128xf32, #tpu.memory_space<vmem>>, vector<8x128xf32>,
    } else {
    }
    %c0 = arith.constant 0 : index
    %c0_1 = arith.constant 0 : index
    %3 = vector.load %arg3[%c0, %c0_1] : memref<128x512xf32, #tpu.memory_space<vmem>>, vector<128x512xf32>
    %c0_2 = arith.constant 0 : index
    %c0_3 = arith.constant 0 : index
    %4 = vector.load %arg9[%c0_2, %c0_3] : memref<8x128xf32, #tpu.memory_space<vmem>>, vector<8x128xf32>
    %c0_4 = arith.constant 0 : index
    %c0_5 = arith.constant 0 : index
    %5 = vector.load %arg10[%c0_4, %c0_5] : memref<8x128xf32, #tpu.memory_space<vmem>>, vector<8x128xf32>
    %c0_i32_6 = arith.constant 0 : i32
    %6 = arith.index_cast %c0_i32_6 : i32 to index
    %c0_7 = arith.constant 0 : index
    %c0_8 = arith.constant 0 : index
    %7 = vector.load %arg2[%6, %c0_7, %c0_8] : memref<8x8x512xf32, #tpu.memory_space<vmem>>, vector<1x8x512xf32>
    %8 = vector.shape_cast %7 : vector<1x8x512xf32> to vector<8x512xf32>
    %cst = arith.constant dense<0.000000e+00> : vector<8x512xf32>
    %9 = tpu.matmul %4, %3, %cst {dimension_numbers = #tpu.dot_dimension_numbers<[1], [0], [0], [1], [0, 0, 1, 1], [], []>} : vector<8x128xf32>, vector<128x512xf32>, vector<8x512xf32> -> vector<8x512xf32>
    %10 = arith.addf %8, %9 : vector<8x512xf32>
    %11 = vector.extract_strided_slice %10 {offsets = [0, 0], sizes = [8, 384], strides = [1, 1]} : vector<8x512xf32> to vector<8x384xf32>
    %12 = arith.negf %11 : vector<8x384xf32>
    %13 = math.exp %12 : vector<8x384xf32>
    %cst_9 = arith.constant 1.000000e+00 : f32
    %14 = vector.broadcast %cst_9 : f32 to vector<8x384xf32>
    %15 = arith.addf %14, %13 : vector<8x384xf32>
    %16 = arith.divf %14, %15 : vector<8x384xf32>
    %17 = vector.extract_strided_slice %10 {offsets = [0, 384], sizes = [8, 128], strides = [1, 1]} : vector<8x512xf32> to vector<8x128xf32>
    %18 = math.tanh %17 : vector<8x128xf32>
    %19 = vector.extract_strided_slice %16 {offsets = [0, 0], sizes = [8, 128], strides = [1, 1]} : vector<8x384xf32> to vector<8x128xf32>
    %20 = vector.extract_strided_slice %16 {offsets = [0, 128], sizes = [8, 128], strides = [1, 1]} : vector<8x384xf32> to vector<8x128xf32>
    %21 = vector.extract_strided_slice %16 {offsets = [0, 256], sizes = [8, 128], strides = [1, 1]} : vector<8x384xf32> to vector<8x128xf32>
    %22 = arith.mulf %20, %5 : vector<8x128xf32>
    %23 = arith.mulf %19, %18 : vector<8x128xf32>
    %24 = arith.addf %22, %23 : vector<8x128xf32>
    %25 = math.tanh %24 : vector<8x128xf32>
    %26 = arith.mulf %21, %25 : vector<8x128xf32>
    %27 = arith.index_cast %c0_i32_6 : i32 to index
    %c0_10 = arith.constant 0 : index
    %c0_11 = arith.constant 0 : index
    %28 = vector.load %arg6[%27, %c0_10, %c0_11] : memref<8x8x128xf32, #tpu.memory_space<vmem>>, vector<1x8x128xf32>
    %29 = vector.shape_cast %28 : vector<1x8x128xf32> to vector<8x128xf32>
    %30 = vector.shape_cast %26 : vector<8x128xf32> to vector<1x8x128xf32>
    tpu.vector_store %arg6[%27, %c0_10, %c0_11], %30 {strides = array<i32>} : memref<8x8x128xf32, #tpu.memory_space<vmem>>, vector<1x8x128xf32>,
    %c1_i32 = arith.constant 1 : i32
    %31 = arith.index_cast %c1_i32 : i32 to index
    %c0_12 = arith.constant 0 : index
    %c0_13 = arith.constant 0 : index
    %32 = vector.load %arg2[%31, %c0_12, %c0_13] : memref<8x8x512xf32, #tpu.memory_space<vmem>>, vector<1x8x512xf32>
    %33 = vector.shape_cast %32 : vector<1x8x512xf32> to vector<8x512xf32>
    %cst_14 = arith.constant dense<0.000000e+00> : vector<8x512xf32>
    %34 = tpu.matmul %26, %3, %cst_14 {dimension_numbers = #tpu.dot_dimension_numbers<[1], [0], [0], [1], [0, 0, 1, 1], [], []>} : vector<8x128xf32>, vector<128x512xf32>, vector<8x512xf32> -> vector<8x512xf32>
    %35 = arith.addf %33, %34 : vector<8x512xf32>
    %36 = vector.extract_strided_slice %35 {offsets = [0, 0], sizes = [8, 384], strides = [1, 1]} : vector<8x512xf32> to vector<8x384xf32>
    %37 = arith.negf %36 : vector<8x384xf32>
    %38 = math.exp %37 : vector<8x384xf32>
    %cst_15 = arith.constant 1.000000e+00 : f32
    %39 = vector.broadcast %cst_15 : f32 to vector<8x384xf32>
    %40 = arith.addf %39, %38 : vector<8x384xf32>
    %41 = arith.divf %39, %40 : vector<8x384xf32>
    %42 = vector.extract_strided_slice %35 {offsets = [0, 384], sizes = [8, 128], strides = [1, 1]} : vector<8x512xf32> to vector<8x128xf32>
    %43 = math.tanh %42 : vector<8x128xf32>
    %44 = vector.extract_strided_slice %41 {offsets = [0, 0], sizes = [8, 128], strides = [1, 1]} : vector<8x384xf32> to vector<8x128xf32>
    %45 = vector.extract_strided_slice %41 {offsets = [0, 128], sizes = [8, 128], strides = [1, 1]} : vector<8x384xf32> to vector<8x128xf32>
    %46 = vector.extract_strided_slice %41 {offsets = [0, 256], sizes = [8, 128], strides = [1, 1]} : vector<8x384xf32> to vector<8x128xf32>
    %47 = arith.mulf %45, %24 : vector<8x128xf32>
    %48 = arith.mulf %44, %43 : vector<8x128xf32>
    %49 = arith.addf %47, %48 : vector<8x128xf32>
    %50 = math.tanh %49 : vector<8x128xf32>
    %51 = arith.mulf %46, %50 : vector<8x128xf32>
    %52 = arith.index_cast %c1_i32 : i32 to index
    %c0_16 = arith.constant 0 : index
    %c0_17 = arith.constant 0 : index
    %53 = vector.load %arg6[%52, %c0_16, %c0_17] : memref<8x8x128xf32, #tpu.memory_space<vmem>>, vector<1x8x128xf32>
    %54 = vector.shape_cast %53 : vector<1x8x128xf32> to vector<8x128xf32>
    %55 = vector.shape_cast %51 : vector<8x128xf32> to vector<1x8x128xf32>
    tpu.vector_store %arg6[%52, %c0_16, %c0_17], %55 {strides = array<i32>} : memref<8x8x128xf32, #tpu.memory_space<vmem>>, vector<1x8x128xf32>,
    %c2_i32 = arith.constant 2 : i32
    %56 = arith.index_cast %c2_i32 : i32 to index
    %c0_18 = arith.constant 0 : index
    %c0_19 = arith.constant 0 : index
    %57 = vector.load %arg2[%56, %c0_18, %c0_19] : memref<8x8x512xf32, #tpu.memory_space<vmem>>, vector<1x8x512xf32>
    %58 = vector.shape_cast %57 : vector<1x8x512xf32> to vector<8x512xf32>
    %cst_20 = arith.constant dense<0.000000e+00> : vector<8x512xf32>
    %59 = tpu.matmul %51, %3, %cst_20 {dimension_numbers = #tpu.dot_dimension_numbers<[1], [0], [0], [1], [0, 0, 1, 1], [], []>} : vector<8x128xf32>, vector<128x512xf32>, vector<8x512xf32> -> vector<8x512xf32>
    %60 = arith.addf %58, %59 : vector<8x512xf32>
    %61 = vector.extract_strided_slice %60 {offsets = [0, 0], sizes = [8, 384], strides = [1, 1]} : vector<8x512xf32> to vector<8x384xf32>
    %62 = arith.negf %61 : vector<8x384xf32>
    %63 = math.exp %62 : vector<8x384xf32>
    %cst_21 = arith.constant 1.000000e+00 : f32
    %64 = vector.broadcast %cst_21 : f32 to vector<8x384xf32>
    %65 = arith.addf %64, %63 : vector<8x384xf32>
    %66 = arith.divf %64, %65 : vector<8x384xf32>
    %67 = vector.extract_strided_slice %60 {offsets = [0, 384], sizes = [8, 128], strides = [1, 1]} : vector<8x512xf32> to vector<8x128xf32>
    %68 = math.tanh %67 : vector<8x128xf32>
    %69 = vector.extract_strided_slice %66 {offsets = [0, 0], sizes = [8, 128], strides = [1, 1]} : vector<8x384xf32> to vector<8x128xf32>
    %70 = vector.extract_strided_slice %66 {offsets = [0, 128], sizes = [8, 128], strides = [1, 1]} : vector<8x384xf32> to vector<8x128xf32>
    %71 = vector.extract_strided_slice %66 {offsets = [0, 256], sizes = [8, 128], strides = [1, 1]} : vector<8x384xf32> to vector<8x128xf32>
    %72 = arith.mulf %70, %49 : vector<8x128xf32>
    %73 = arith.mulf %69, %68 : vector<8x128xf32>
    %74 = arith.addf %72, %73 : vector<8x128xf32>
    %75 = math.tanh %74 : vector<8x128xf32>
    %76 = arith.mulf %71, %75 : vector<8x128xf32>
    %77 = arith.index_cast %c2_i32 : i32 to index
    %c0_22 = arith.constant 0 : index
    %c0_23 = arith.constant 0 : index
    %78 = vector.load %arg6[%77, %c0_22, %c0_23] : memref<8x8x128xf32, #tpu.memory_space<vmem>>, vector<1x8x128xf32>
    %79 = vector.shape_cast %78 : vector<1x8x128xf32> to vector<8x128xf32>
    %80 = vector.shape_cast %76 : vector<8x128xf32> to vector<1x8x128xf32>
    tpu.vector_store %arg6[%77, %c0_22, %c0_23], %80 {strides = array<i32>} : memref<8x8x128xf32, #tpu.memory_space<vmem>>, vector<1x8x128xf32>,
    %c3_i32 = arith.constant 3 : i32
    %81 = arith.index_cast %c3_i32 : i32 to index
    %c0_24 = arith.constant 0 : index
    %c0_25 = arith.constant 0 : index
    %82 = vector.load %arg2[%81, %c0_24, %c0_25] : memref<8x8x512xf32, #tpu.memory_space<vmem>>, vector<1x8x512xf32>
    %83 = vector.shape_cast %82 : vector<1x8x512xf32> to vector<8x512xf32>
    %cst_26 = arith.constant dense<0.000000e+00> : vector<8x512xf32>
    %84 = tpu.matmul %76, %3, %cst_26 {dimension_numbers = #tpu.dot_dimension_numbers<[1], [0], [0], [1], [0, 0, 1, 1], [], []>} : vector<8x128xf32>, vector<128x512xf32>, vector<8x512xf32> -> vector<8x512xf32>
    %85 = arith.addf %83, %84 : vector<8x512xf32>
    %86 = vector.extract_strided_slice %85 {offsets = [0, 0], sizes = [8, 384], strides = [1, 1]} : vector<8x512xf32> to vector<8x384xf32>
    %87 = arith.negf %86 : vector<8x384xf32>
    %88 = math.exp %87 : vector<8x384xf32>
    %cst_27 = arith.constant 1.000000e+00 : f32
    %89 = vector.broadcast %cst_27 : f32 to vector<8x384xf32>
    %90 = arith.addf %89, %88 : vector<8x384xf32>
    %91 = arith.divf %89, %90 : vector<8x384xf32>
    %92 = vector.extract_strided_slice %85 {offsets = [0, 384], sizes = [8, 128], strides = [1, 1]} : vector<8x512xf32> to vector<8x128xf32>
    %93 = math.tanh %92 : vector<8x128xf32>
    %94 = vector.extract_strided_slice %91 {offsets = [0, 0], sizes = [8, 128], strides = [1, 1]} : vector<8x384xf32> to vector<8x128xf32>
    %95 = vector.extract_strided_slice %91 {offsets = [0, 128], sizes = [8, 128], strides = [1, 1]} : vector<8x384xf32> to vector<8x128xf32>
    %96 = vector.extract_strided_slice %91 {offsets = [0, 256], sizes = [8, 128], strides = [1, 1]} : vector<8x384xf32> to vector<8x128xf32>
    %97 = arith.mulf %95, %74 : vector<8x128xf32>
    %98 = arith.mulf %94, %93 : vector<8x128xf32>
    %99 = arith.addf %97, %98 : vector<8x128xf32>
    %100 = math.tanh %99 : vector<8x128xf32>
    %101 = arith.mulf %96, %100 : vector<8x128xf32>
    %102 = arith.index_cast %c3_i32 : i32 to index
    %c0_28 = arith.constant 0 : index
    %c0_29 = arith.constant 0 : index
    %103 = vector.load %arg6[%102, %c0_28, %c0_29] : memref<8x8x128xf32, #tpu.memory_space<vmem>>, vector<1x8x128xf32>
    %104 = vector.shape_cast %103 : vector<1x8x128xf32> to vector<8x128xf32>
    %105 = vector.shape_cast %101 : vector<8x128xf32> to vector<1x8x128xf32>
    tpu.vector_store %arg6[%102, %c0_28, %c0_29], %105 {strides = array<i32>} : memref<8x8x128xf32, #tpu.memory_space<vmem>>, vector<1x8x128xf32>,
    %c4_i32 = arith.constant 4 : i32
    %106 = arith.index_cast %c4_i32 : i32 to index
    %c0_30 = arith.constant 0 : index
    %c0_31 = arith.constant 0 : index
    %107 = vector.load %arg2[%106, %c0_30, %c0_31] : memref<8x8x512xf32, #tpu.memory_space<vmem>>, vector<1x8x512xf32>
    %108 = vector.shape_cast %107 : vector<1x8x512xf32> to vector<8x512xf32>
    %cst_32 = arith.constant dense<0.000000e+00> : vector<8x512xf32>
    %109 = tpu.matmul %101, %3, %cst_32 {dimension_numbers = #tpu.dot_dimension_numbers<[1], [0], [0], [1], [0, 0, 1, 1], [], []>} : vector<8x128xf32>, vector<128x512xf32>, vector<8x512xf32> -> vector<8x512xf32>
    %110 = arith.addf %108, %109 : vector<8x512xf32>
    %111 = vector.extract_strided_slice %110 {offsets = [0, 0], sizes = [8, 384], strides = [1, 1]} : vector<8x512xf32> to vector<8x384xf32>
    %112 = arith.negf %111 : vector<8x384xf32>
    %113 = math.exp %112 : vector<8x384xf32>
    %cst_33 = arith.constant 1.000000e+00 : f32
    %114 = vector.broadcast %cst_33 : f32 to vector<8x384xf32>
    %115 = arith.addf %114, %113 : vector<8x384xf32>
    %116 = arith.divf %114, %115 : vector<8x384xf32>
    %117 = vector.extract_strided_slice %110 {offsets = [0, 384], sizes = [8, 128], strides = [1, 1]} : vector<8x512xf32> to vector<8x128xf32>
    %118 = math.tanh %117 : vector<8x128xf32>
    %119 = vector.extract_strided_slice %116 {offsets = [0, 0], sizes = [8, 128], strides = [1, 1]} : vector<8x384xf32> to vector<8x128xf32>
    %120 = vector.extract_strided_slice %116 {offsets = [0, 128], sizes = [8, 128], strides = [1, 1]} : vector<8x384xf32> to vector<8x128xf32>
    %121 = vector.extract_strided_slice %116 {offsets = [0, 256], sizes = [8, 128], strides = [1, 1]} : vector<8x384xf32> to vector<8x128xf32>
    %122 = arith.mulf %120, %99 : vector<8x128xf32>
    %123 = arith.mulf %119, %118 : vector<8x128xf32>
    %124 = arith.addf %122, %123 : vector<8x128xf32>
    %125 = math.tanh %124 : vector<8x128xf32>
    %126 = arith.mulf %121, %125 : vector<8x128xf32>
    %127 = arith.index_cast %c4_i32 : i32 to index
    %c0_34 = arith.constant 0 : index
    %c0_35 = arith.constant 0 : index
    %128 = vector.load %arg6[%127, %c0_34, %c0_35] : memref<8x8x128xf32, #tpu.memory_space<vmem>>, vector<1x8x128xf32>
    %129 = vector.shape_cast %128 : vector<1x8x128xf32> to vector<8x128xf32>
    %130 = vector.shape_cast %126 : vector<8x128xf32> to vector<1x8x128xf32>
    tpu.vector_store %arg6[%127, %c0_34, %c0_35], %130 {strides = array<i32>} : memref<8x8x128xf32, #tpu.memory_space<vmem>>, vector<1x8x128xf32>,
    %c5_i32 = arith.constant 5 : i32
    %131 = arith.index_cast %c5_i32 : i32 to index
    %c0_36 = arith.constant 0 : index
    %c0_37 = arith.constant 0 : index
    %132 = vector.load %arg2[%131, %c0_36, %c0_37] : memref<8x8x512xf32, #tpu.memory_space<vmem>>, vector<1x8x512xf32>
    %133 = vector.shape_cast %132 : vector<1x8x512xf32> to vector<8x512xf32>
    %cst_38 = arith.constant dense<0.000000e+00> : vector<8x512xf32>
    %134 = tpu.matmul %126, %3, %cst_38 {dimension_numbers = #tpu.dot_dimension_numbers<[1], [0], [0], [1], [0, 0, 1, 1], [], []>} : vector<8x128xf32>, vector<128x512xf32>, vector<8x512xf32> -> vector<8x512xf32>
    %135 = arith.addf %133, %134 : vector<8x512xf32>
    %136 = vector.extract_strided_slice %135 {offsets = [0, 0], sizes = [8, 384], strides = [1, 1]} : vector<8x512xf32> to vector<8x384xf32>
    %137 = arith.negf %136 : vector<8x384xf32>
    %138 = math.exp %137 : vector<8x384xf32>
    %cst_39 = arith.constant 1.000000e+00 : f32
    %139 = vector.broadcast %cst_39 : f32 to vector<8x384xf32>
    %140 = arith.addf %139, %138 : vector<8x384xf32>
    %141 = arith.divf %139, %140 : vector<8x384xf32>
    %142 = vector.extract_strided_slice %135 {offsets = [0, 384], sizes = [8, 128], strides = [1, 1]} : vector<8x512xf32> to vector<8x128xf32>
    %143 = math.tanh %142 : vector<8x128xf32>
    %144 = vector.extract_strided_slice %141 {offsets = [0, 0], sizes = [8, 128], strides = [1, 1]} : vector<8x384xf32> to vector<8x128xf32>
    %145 = vector.extract_strided_slice %141 {offsets = [0, 128], sizes = [8, 128], strides = [1, 1]} : vector<8x384xf32> to vector<8x128xf32>
    %146 = vector.extract_strided_slice %141 {offsets = [0, 256], sizes = [8, 128], strides = [1, 1]} : vector<8x384xf32> to vector<8x128xf32>
    %147 = arith.mulf %145, %124 : vector<8x128xf32>
    %148 = arith.mulf %144, %143 : vector<8x128xf32>
    %149 = arith.addf %147, %148 : vector<8x128xf32>
    %150 = math.tanh %149 : vector<8x128xf32>
    %151 = arith.mulf %146, %150 : vector<8x128xf32>
    %152 = arith.index_cast %c5_i32 : i32 to index
    %c0_40 = arith.constant 0 : index
    %c0_41 = arith.constant 0 : index
    %153 = vector.load %arg6[%152, %c0_40, %c0_41] : memref<8x8x128xf32, #tpu.memory_space<vmem>>, vector<1x8x128xf32>
    %154 = vector.shape_cast %153 : vector<1x8x128xf32> to vector<8x128xf32>
    %155 = vector.shape_cast %151 : vector<8x128xf32> to vector<1x8x128xf32>
    tpu.vector_store %arg6[%152, %c0_40, %c0_41], %155 {strides = array<i32>} : memref<8x8x128xf32, #tpu.memory_space<vmem>>, vector<1x8x128xf32>,
    %c6_i32 = arith.constant 6 : i32
    %156 = arith.index_cast %c6_i32 : i32 to index
    %c0_42 = arith.constant 0 : index
    %c0_43 = arith.constant 0 : index
    %157 = vector.load %arg2[%156, %c0_42, %c0_43] : memref<8x8x512xf32, #tpu.memory_space<vmem>>, vector<1x8x512xf32>
    %158 = vector.shape_cast %157 : vector<1x8x512xf32> to vector<8x512xf32>
    %cst_44 = arith.constant dense<0.000000e+00> : vector<8x512xf32>
    %159 = tpu.matmul %151, %3, %cst_44 {dimension_numbers = #tpu.dot_dimension_numbers<[1], [0], [0], [1], [0, 0, 1, 1], [], []>} : vector<8x128xf32>, vector<128x512xf32>, vector<8x512xf32> -> vector<8x512xf32>
    %160 = arith.addf %158, %159 : vector<8x512xf32>
    %161 = vector.extract_strided_slice %160 {offsets = [0, 0], sizes = [8, 384], strides = [1, 1]} : vector<8x512xf32> to vector<8x384xf32>
    %162 = arith.negf %161 : vector<8x384xf32>
    %163 = math.exp %162 : vector<8x384xf32>
    %cst_45 = arith.constant 1.000000e+00 : f32
    %164 = vector.broadcast %cst_45 : f32 to vector<8x384xf32>
    %165 = arith.addf %164, %163 : vector<8x384xf32>
    %166 = arith.divf %164, %165 : vector<8x384xf32>
    %167 = vector.extract_strided_slice %160 {offsets = [0, 384], sizes = [8, 128], strides = [1, 1]} : vector<8x512xf32> to vector<8x128xf32>
    %168 = math.tanh %167 : vector<8x128xf32>
    %169 = vector.extract_strided_slice %166 {offsets = [0, 0], sizes = [8, 128], strides = [1, 1]} : vector<8x384xf32> to vector<8x128xf32>
    %170 = vector.extract_strided_slice %166 {offsets = [0, 128], sizes = [8, 128], strides = [1, 1]} : vector<8x384xf32> to vector<8x128xf32>
    %171 = vector.extract_strided_slice %166 {offsets = [0, 256], sizes = [8, 128], strides = [1, 1]} : vector<8x384xf32> to vector<8x128xf32>
    %172 = arith.mulf %170, %149 : vector<8x128xf32>
    %173 = arith.mulf %169, %168 : vector<8x128xf32>
    %174 = arith.addf %172, %173 : vector<8x128xf32>
    %175 = math.tanh %174 : vector<8x128xf32>
    %176 = arith.mulf %171, %175 : vector<8x128xf32>
    %177 = arith.index_cast %c6_i32 : i32 to index
    %c0_46 = arith.constant 0 : index
    %c0_47 = arith.constant 0 : index
    %178 = vector.load %arg6[%177, %c0_46, %c0_47] : memref<8x8x128xf32, #tpu.memory_space<vmem>>, vector<1x8x128xf32>
    %179 = vector.shape_cast %178 : vector<1x8x128xf32> to vector<8x128xf32>
    %180 = vector.shape_cast %176 : vector<8x128xf32> to vector<1x8x128xf32>
    tpu.vector_store %arg6[%177, %c0_46, %c0_47], %180 {strides = array<i32>} : memref<8x8x128xf32, #tpu.memory_space<vmem>>, vector<1x8x128xf32>,
    %c7_i32 = arith.constant 7 : i32
    %181 = arith.index_cast %c7_i32 : i32 to index
    %c0_48 = arith.constant 0 : index
    %c0_49 = arith.constant 0 : index
    %182 = vector.load %arg2[%181, %c0_48, %c0_49] : memref<8x8x512xf32, #tpu.memory_space<vmem>>, vector<1x8x512xf32>
    %183 = vector.shape_cast %182 : vector<1x8x512xf32> to vector<8x512xf32>
    %cst_50 = arith.constant dense<0.000000e+00> : vector<8x512xf32>
    %184 = tpu.matmul %176, %3, %cst_50 {dimension_numbers = #tpu.dot_dimension_numbers<[1], [0], [0], [1], [0, 0, 1, 1], [], []>} : vector<8x128xf32>, vector<128x512xf32>, vector<8x512xf32> -> vector<8x512xf32>
    %185 = arith.addf %183, %184 : vector<8x512xf32>
    %186 = vector.extract_strided_slice %185 {offsets = [0, 0], sizes = [8, 384], strides = [1, 1]} : vector<8x512xf32> to vector<8x384xf32>
    %187 = arith.negf %186 : vector<8x384xf32>
    %188 = math.exp %187 : vector<8x384xf32>
    %cst_51 = arith.constant 1.000000e+00 : f32
    %189 = vector.broadcast %cst_51 : f32 to vector<8x384xf32>
    %190 = arith.addf %189, %188 : vector<8x384xf32>
    %191 = arith.divf %189, %190 : vector<8x384xf32>
    %192 = vector.extract_strided_slice %185 {offsets = [0, 384], sizes = [8, 128], strides = [1, 1]} : vector<8x512xf32> to vector<8x128xf32>
    %193 = math.tanh %192 : vector<8x128xf32>
    %194 = vector.extract_strided_slice %191 {offsets = [0, 0], sizes = [8, 128], strides = [1, 1]} : vector<8x384xf32> to vector<8x128xf32>
    %195 = vector.extract_strided_slice %191 {offsets = [0, 128], sizes = [8, 128], strides = [1, 1]} : vector<8x384xf32> to vector<8x128xf32>
    %196 = vector.extract_strided_slice %191 {offsets = [0, 256], sizes = [8, 128], strides = [1, 1]} : vector<8x384xf32> to vector<8x128xf32>
    %197 = arith.mulf %195, %174 : vector<8x128xf32>
    %198 = arith.mulf %194, %193 : vector<8x128xf32>
    %199 = arith.addf %197, %198 : vector<8x128xf32>
    %200 = math.tanh %199 : vector<8x128xf32>
    %201 = arith.mulf %196, %200 : vector<8x128xf32>
    %202 = arith.index_cast %c7_i32 : i32 to index
    %c0_52 = arith.constant 0 : index
    %c0_53 = arith.constant 0 : index
    %203 = vector.load %arg6[%202, %c0_52, %c0_53] : memref<8x8x128xf32, #tpu.memory_space<vmem>>, vector<1x8x128xf32>
    %204 = vector.shape_cast %203 : vector<1x8x128xf32> to vector<8x128xf32>
    %205 = vector.shape_cast %201 : vector<8x128xf32> to vector<1x8x128xf32>
    tpu.vector_store %arg6[%202, %c0_52, %c0_53], %205 {strides = array<i32>} : memref<8x8x128xf32, #tpu.memory_space<vmem>>, vector<1x8x128xf32>,
    %c8_i32 = arith.constant 8 : i32
    %c0_54 = arith.constant 0 : index
    %c0_55 = arith.constant 0 : index
    %206 = vector.load %arg9[%c0_54, %c0_55] : memref<8x128xf32, #tpu.memory_space<vmem>>, vector<8x128xf32>
    tpu.vector_store %arg9[%c0_54, %c0_55], %201 {strides = array<i32>} : memref<8x128xf32, #tpu.memory_space<vmem>>, vector<8x128xf32>,
    %c0_56 = arith.constant 0 : index
    %c0_57 = arith.constant 0 : index
    %207 = vector.load %arg10[%c0_56, %c0_57] : memref<8x128xf32, #tpu.memory_space<vmem>>, vector<8x128xf32>
    tpu.vector_store %arg10[%c0_56, %c0_57], %199 {strides = array<i32>} : memref<8x128xf32, #tpu.memory_space<vmem>>, vector<8x128xf32>,
    %c0_58 = arith.constant 0 : index
    %c0_59 = arith.constant 0 : index
    %208 = vector.load %arg7[%c0_58, %c0_59] : memref<8x128xf32, #tpu.memory_space<vmem>>, vector<8x128xf32>
    tpu.vector_store %arg7[%c0_58, %c0_59], %201 {strides = array<i32>} : memref<8x128xf32, #tpu.memory_space<vmem>>, vector<8x128xf32>,
    %c0_60 = arith.constant 0 : index
    %c0_61 = arith.constant 0 : index
    %209 = vector.load %arg8[%c0_60, %c0_61] : memref<8x128xf32, #tpu.memory_space<vmem>>, vector<8x128xf32>
    tpu.vector_store %arg8[%c0_60, %c0_61], %199 {strides = array<i32>} : memref<8x128xf32, #tpu.memory_space<vmem>>, vector<8x128xf32>,
    return
  }
  func.func @transform_0(%arg0: i32, %arg1: i32) -> (i32, i32, i32) {
    %c0_i32 = arith.constant 0 : i32
    %c0_i32_0 = arith.constant 0 : i32
    return %arg1, %arg0, %c0_i32 : i32, i32, i32
  }
  func.func @transform_1(%arg0: i32, %arg1: i32) -> (i32, i32) {
    %c0_i32 = arith.constant 0 : i32
    %c0_i32_0 = arith.constant 0 : i32
    %c0_i32_1 = arith.constant 0 : i32
    return %c0_i32, %c0_i32_0 : i32, i32
  }
  func.func @transform_2(%arg0: i32, %arg1: i32) -> (i32, i32) {
    %c0_i32 = arith.constant 0 : i32
    %c0_i32_0 = arith.constant 0 : i32
    return %arg0, %c0_i32 : i32, i32
  }
  func.func @transform_3(%arg0: i32, %arg1: i32) -> (i32, i32) {
    %c0_i32 = arith.constant 0 : i32
    %c0_i32_0 = arith.constant 0 : i32
    return %arg0, %c0_i32 : i32, i32
  }
  func.func @transform_4(%arg0: i32, %arg1: i32) -> (i32, i32, i32) {
    %c0_i32 = arith.constant 0 : i32
    %c0_i32_0 = arith.constant 0 : i32
    return %arg1, %arg0, %c0_i32 : i32, i32, i32
  }
  func.func @transform_5(%arg0: i32, %arg1: i32) -> (i32, i32) {
    %c0_i32 = arith.constant 0 : i32
    %c0_i32_0 = arith.constant 0 : i32
    return %arg0, %c0_i32 : i32, i32
  }
  func.func @transform_6(%arg0: i32, %arg1: i32) -> (i32, i32) {
    %c0_i32 = arith.constant 0 : i32
    %c0_i32_0 = arith.constant 0 : i32
    return %arg0, %c0_i32 : i32, i32
  }
}

module attributes {stable_mosaic.version = 11 : i64} {
  func.func @_matmul_bias_kernel(%arg0: i32, %arg1: i32, %arg2: memref<64x128xf32, #tpu.memory_space<vmem>>, %arg3: memref<128x128xf32, #tpu.memory_space<vmem>>, %arg4: memref<1x128xf32, #tpu.memory_space<vmem>>, %arg5: memref<64x128xf32, #tpu.memory_space<vmem>>) attributes {dimension_semantics = [#tpu.dimension_semantics<parallel>, #tpu.dimension_semantics<parallel>], iteration_bounds = array<i64: 1, 1>, scalar_prefetch = 0 : i64, scratch_operands = 0 : i64, tpu.core_type = #tpu.core_type<tc>, window_params = [{transform_indices = @transform_0, window_bounds = array<i64: 64, 128>}, {transform_indices = @transform_1, window_bounds = array<i64: 128, 128>}, {transform_indices = @transform_2, window_bounds = array<i64: 1, 128>}, {transform_indices = @transform_3, window_bounds = array<i64: 64, 128>}]} {
    %c0 = arith.constant 0 : index
    %c0_0 = arith.constant 0 : index
    %0 = vector.load %arg2[%c0, %c0_0] : memref<64x128xf32, #tpu.memory_space<vmem>>, vector<64x128xf32>
    %c0_1 = arith.constant 0 : index
    %c0_2 = arith.constant 0 : index
    %1 = vector.load %arg3[%c0_1, %c0_2] : memref<128x128xf32, #tpu.memory_space<vmem>>, vector<128x128xf32>
    %cst = arith.constant dense<0.000000e+00> : vector<64x128xf32>
    %2 = tpu.matmul %0, %1, %cst {dimension_numbers = #tpu.dot_dimension_numbers<[1], [0], [0], [1], [0, 0, 1, 1], [], []>} : vector<64x128xf32>, vector<128x128xf32>, vector<64x128xf32> -> vector<64x128xf32>
    %c0_3 = arith.constant 0 : index
    %c0_4 = arith.constant 0 : index
    %3 = vector.load %arg4[%c0_3, %c0_4] : memref<1x128xf32, #tpu.memory_space<vmem>>, vector<1x128xf32>
    %4 = vector.broadcast %3 : vector<1x128xf32> to vector<64x128xf32>
    %5 = arith.addf %2, %4 : vector<64x128xf32>
    %c0_5 = arith.constant 0 : index
    %c0_6 = arith.constant 0 : index
    %6 = vector.load %arg5[%c0_5, %c0_6] : memref<64x128xf32, #tpu.memory_space<vmem>>, vector<64x128xf32>
    tpu.vector_store %arg5[%c0_5, %c0_6], %5 {strides = array<i32>} : memref<64x128xf32, #tpu.memory_space<vmem>>, vector<64x128xf32>,
    return
  }
  func.func @transform_0(%arg0: i32, %arg1: i32) -> (i32, i32) {
    %c0_i32 = arith.constant 0 : i32
    %c0_i32_0 = arith.constant 0 : i32
    return %arg1, %c0_i32 : i32, i32
  }
  func.func @transform_1(%arg0: i32, %arg1: i32) -> (i32, i32) {
    %c0_i32 = arith.constant 0 : i32
    %c0_i32_0 = arith.constant 0 : i32
    return %c0_i32, %arg0 : i32, i32
  }
  func.func @transform_2(%arg0: i32, %arg1: i32) -> (i32, i32) {
    %c0_i32 = arith.constant 0 : i32
    %c0_i32_0 = arith.constant 0 : i32
    return %c0_i32, %arg0 : i32, i32
  }
  func.func @transform_3(%arg0: i32, %arg1: i32) -> (i32, i32) {
    %c0_i32 = arith.constant 0 : i32
    return %arg1, %arg0 : i32, i32
  }
}

</mosaic_0001>

<llo_original>
// kernel: poem_rnn_forward.7
$region0: #{poem_rnn_forward.7}
  #allocation0 [shape = 'u32[]', space=smem, size = 0x4, offset = 0x4, fixed_abs, tag = 'smem constant byte address 0x4 - core index']
  #allocation1 [shape = 'u32[72,128]{1,0:T(1,128)}', space=vmem, size = 0x9000, scoped, tag = 'internal scratch']
  %s0 = inlined_call_operand.vmem [shape: f32[64,128], index: 0, kind: input, shape index: {}]
  %s1 = inlined_call_operand.vmem [shape: f32[128,128], index: 1, kind: input, shape index: {}]
  %s2 = inlined_call_operand.vmem [shape: f32[1,128], index: 2, kind: input, shape index: {}]
  %s3 = inlined_call_operand.vmem [shape: f32[64,128], index: 3, kind: output, shape index: {}]
  %s4 = sld [smem:[#allocation0]]
  $region22: #{poem_rnn_forward.7} parent=0
    _
  %s6 = ssub.s32 1, %s4
  %s7 = scalar_select 0, %s6, %s4
  // Predicated region
  $region2: #{poem_rnn_forward.7} parent=0 // pred_check
    _
  $region3: #{poem_rnn_forward.7} parent=0 // pred_check_branch
    %9 = sbr.rel (0) target = $region5
  $region4: #{poem_rnn_forward.7} parent=0 // pred_region
    _
  $region5: #{poem_rnn_forward.7} parent=0 // pred_fallthru
    _
  // Predicated region
  $region6: #{poem_rnn_forward.7} parent=0 // pred_check
    _
  $region7: #{poem_rnn_forward.7} parent=0 // pred_check_branch
    %11 = sbr.rel (0) target = $region9
  $region8: #{poem_rnn_forward.7} parent=0 // pred_region
    _
  $region9: #{poem_rnn_forward.7} parent=0 // pred_fallthru
    _
  // Predicated region
  $region10: #{poem_rnn_forward.7} parent=0 // pred_check
    _
  $region11: #{poem_rnn_forward.7} parent=0 // pred_check_branch
    %13 = sbr.rel (0) target = $region13
  $region12: #{poem_rnn_forward.7} parent=0 // pred_region
    _
  $region13: #{poem_rnn_forward.7} parent=0 // pred_fallthru
    _
  %v14 = vld [vmem:[%s0] sm:$0xff]
  %v15 = vld [vmem:[%s0 + $0x8] sm:$0xff]
  %v16 = vld [vmem:[%s0 + $0x10] sm:$0xff]
  %v17 = vld [vmem:[%s0 + $0x18] sm:$0xff]
  %v18 = vld [vmem:[%s0 + $0x20] sm:$0xff]
  %v19 = vld [vmem:[%s0 + $0x28] sm:$0xff]
  %v20 = vld [vmem:[%s0 + $0x30] sm:$0xff]
  %v21 = vld [vmem:[%s0 + $0x38] sm:$0xff]
  %v22 = vld [vmem:[%s1] sm:$0xff]
  %v23 = vld [vmem:[%s1 + $0x8] sm:$0xff]
  %v24 = vld [vmem:[%s1 + $0x10] sm:$0xff]
  %v25 = vld [vmem:[%s1 + $0x18] sm:$0xff]
  %v26 = vld [vmem:[%s1 + $0x20] sm:$0xff]
  %v27 = vld [vmem:[%s1 + $0x28] sm:$0xff]
  %v28 = vld [vmem:[%s1 + $0x30] sm:$0xff]
  %v29 = vld [vmem:[%s1 + $0x38] sm:$0xff]
  %v30 = vld [vmem:[%s1 + $0x40] sm:$0xff]
  %v31 = vld [vmem:[%s1 + $0x48] sm:$0xff]
  %v32 = vld [vmem:[%s1 + $0x50] sm:$0xff]
  %v33 = vld [vmem:[%s1 + $0x58] sm:$0xff]
  %v34 = vld [vmem:[%s1 + $0x60] sm:$0xff]
  %v35 = vld [vmem:[%s1 + $0x68] sm:$0xff]
  %v36 = vld [vmem:[%s1 + $0x70] sm:$0xff]
  %v37 = vld [vmem:[%s1 + $0x78] sm:$0xff]
  %v38 = vld [vmem:[%s2] sm:$0x1]
  %v40 = vperm.slane %v38, 0
  %42 = vmatpush.msra.mxu0 %v37
  %43 = vmatpush.msra.mxu0 %v36
  %44 = vmatpush.msra.mxu0 %v35
  %45 = vmatpush.msra.mxu0 %v34
  %46 = vmatpush.msra.mxu0 %v33
  %47 = vmatpush.msra.mxu0 %v32
  %48 = vmatpush.msra.mxu0 %v31
  %49 = vmatpush.msra.mxu0 %v30
  %50 = vmatpush.msra.mxu0 %v29
  %51 = vmatpush.msra.mxu0 %v28
  %52 = vmatpush.msra.mxu0 %v27
  %53 = vmatpush.msra.mxu0 %v26
  %54 = vmatpush.msra.mxu0 %v25
  %55 = vmatpush.msra.mxu0 %v24
  %56 = vmatpush.msra.mxu0 %v23
  %57 = vmatpush.msra.mxu0 %v22
  %58 = vmatmul.f32.gmra.mxu0 %v14
  %v59 = vpop.f32.mrf.mxu0
  %v60 = vadd.f32 %v40, %v59
  %61 = vmatmul.f32.gmra.mxu0 %v15
  %v62 = vpop.f32.mrf.mxu0
  %v63 = vadd.f32 %v40, %v62
  %64 = vmatmul.f32.gmra.mxu0 %v16
  %v65 = vpop.f32.mrf.mxu0
  %v66 = vadd.f32 %v40, %v65
  %67 = vmatmul.f32.gmra.mxu0 %v17
  %v68 = vpop.f32.mrf.mxu0
  %v69 = vadd.f32 %v40, %v68
  %70 = vmatmul.f32.gmra.mxu0 %v18
  %v71 = vpop.f32.mrf.mxu0
  %v72 = vadd.f32 %v40, %v71
  %73 = vmatmul.f32.gmra.mxu0 %v19
  %v74 = vpop.f32.mrf.mxu0
  %v75 = vadd.f32 %v40, %v74
  %76 = vmatmul.f32.gmra.mxu0 %v20
  %v77 = vpop.f32.mrf.mxu0
  %v78 = vadd.f32 %v40, %v77
  %79 = vmatmul.f32.gmra.mxu0 %v21
  %v80 = vpop.f32.mrf.mxu0
  %v81 = vadd.f32 %v40, %v80
  %82 = vdwg.mxu0
  %83 = vst [vmem:[%s3] sm:$0xff] %v60
  %84 = vst [vmem:[%s3 + $0x8] sm:$0xff] %v63
  %85 = vst [vmem:[%s3 + $0x10] sm:$0xff] %v66
  %86 = vst [vmem:[%s3 + $0x18] sm:$0xff] %v69
  %87 = vst [vmem:[%s3 + $0x20] sm:$0xff] %v72
  %88 = vst [vmem:[%s3 + $0x28] sm:$0xff] %v75
  %89 = vst [vmem:[%s3 + $0x30] sm:$0xff] %v78
  %90 = vst [vmem:[%s3 + $0x38] sm:$0xff] %v81
  // Predicated region
  $region14: #{poem_rnn_forward.7} parent=0 // pred_check
    _
  $region15: #{poem_rnn_forward.7} parent=0 // pred_check_branch
    %92 = sbr.rel (0) target = $region17
  $region16: #{poem_rnn_forward.7} parent=0 // pred_region
    _
  $region17: #{poem_rnn_forward.7} parent=0 // pred_fallthru
    _
  // Predicated region
  $region18: #{poem_rnn_forward.7} parent=0 // pred_check
    _
  $region19: #{poem_rnn_forward.7} parent=0 // pred_check_branch
    %94 = sbr.rel (0) target = $region21
  $region20: #{poem_rnn_forward.7} parent=0 // pred_region
    _
  $region21: #{poem_rnn_forward.7} parent=0 // pred_fallthru
    _

// kernel: poem_rnn_forward.5
$region0: #{poem_rnn_forward.5}
  #allocation0 [shape = 'u32[]', space=smem, size = 0x4, offset = 0x4, fixed_abs, tag = 'smem constant byte address 0x4 - core index']
  #allocation1 [shape = 'u32[72,128]{1,0:T(1,128)}', space=vmem, size = 0x9000, scoped, tag = 'internal scratch']
  %s0 = inlined_call_operand.vmem [shape: f32[64,128], index: 0, kind: input, shape index: {}]
  %s1 = inlined_call_operand.vmem [shape: f32[128,512], index: 1, kind: input, shape index: {}]
  %s2 = inlined_call_operand.vmem [shape: f32[1,512], index: 2, kind: input, shape index: {}]
  %s3 = inlined_call_operand.vmem [shape: f32[64,512], index: 3, kind: output, shape index: {}]
  %s4 = sld [smem:[#allocation0]]
  $region22: #{poem_rnn_forward.5} parent=0
    _
  %s6 = ssub.s32 1, %s4
  %s7 = scalar_select 0, %s6, %s4
  // Predicated region
  $region2: #{poem_rnn_forward.5} parent=0 // pred_check
    _
  $region3: #{poem_rnn_forward.5} parent=0 // pred_check_branch
    %9 = sbr.rel (0) target = $region5
  $region4: #{poem_rnn_forward.5} parent=0 // pred_region
    _
  $region5: #{poem_rnn_forward.5} parent=0 // pred_fallthru
    _
  // Predicated region
  $region6: #{poem_rnn_forward.5} parent=0 // pred_check
    _
  $region7: #{poem_rnn_forward.5} parent=0 // pred_check_branch
    %11 = sbr.rel (0) target = $region9
  $region8: #{poem_rnn_forward.5} parent=0 // pred_region
    _
  $region9: #{poem_rnn_forward.5} parent=0 // pred_fallthru
    _
  // Predicated region
  $region10: #{poem_rnn_forward.5} parent=0 // pred_check
    _
  $region11: #{poem_rnn_forward.5} parent=0 // pred_check_branch
    %13 = sbr.rel (0) target = $region13
  $region12: #{poem_rnn_forward.5} parent=0 // pred_region
    _
  $region13: #{poem_rnn_forward.5} parent=0 // pred_fallthru
    _
  %v14 = vld [vmem:[%s0] sm:$0xff]
  %v15 = vld [vmem:[%s0 + $0x8] sm:$0xff]
  %v16 = vld [vmem:[%s0 + $0x10] sm:$0xff]
  %v17 = vld [vmem:[%s0 + $0x18] sm:$0xff]
  %v18 = vld [vmem:[%s0 + $0x20] sm:$0xff]
  %v19 = vld [vmem:[%s0 + $0x28] sm:$0xff]
  %v20 = vld [vmem:[%s0 + $0x30] sm:$0xff]
  %v21 = vld [vmem:[%s0 + $0x38] sm:$0xff]
  %v22 = vld [vmem:[%s1] sm:$0xff]
  %v23 = vld [vmem:[%s1 + $0x8] sm:$0xff]
  %v24 = vld [vmem:[%s1 + $0x10] sm:$0xff]
  %v25 = vld [vmem:[%s1 + $0x18] sm:$0xff]
  %v26 = vld [vmem:[%s1 + $0x20] sm:$0xff]
  %v27 = vld [vmem:[%s1 + $0x28] sm:$0xff]
  %v28 = vld [vmem:[%s1 + $0x30] sm:$0xff]
  %v29 = vld [vmem:[%s1 + $0x38] sm:$0xff]
  %v30 = vld [vmem:[%s1 + $0x40] sm:$0xff]
  %v31 = vld [vmem:[%s1 + $0x48] sm:$0xff]
  %v32 = vld [vmem:[%s1 + $0x50] sm:$0xff]
  %v33 = vld [vmem:[%s1 + $0x58] sm:$0xff]
  %v34 = vld [vmem:[%s1 + $0x60] sm:$0xff]
  %v35 = vld [vmem:[%s1 + $0x68] sm:$0xff]
  %v36 = vld [vmem:[%s1 + $0x70] sm:$0xff]
  %v37 = vld [vmem:[%s1 + $0x78] sm:$0xff]
  %v38 = vld [vmem:[%s1 + $0x80] sm:$0xff]
  %v39 = vld [vmem:[%s1 + $0x88] sm:$0xff]
  %v40 = vld [vmem:[%s1 + $0x90] sm:$0xff]
  %v41 = vld [vmem:[%s1 + $0x98] sm:$0xff]
  %v42 = vld [vmem:[%s1 + $0xa0] sm:$0xff]
  %v43 = vld [vmem:[%s1 + $0xa8] sm:$0xff]
  %v44 = vld [vmem:[%s1 + $0xb0] sm:$0xff]
  %v45 = vld [vmem:[%s1 + $0xb8] sm:$0xff]
  %v46 = vld [vmem:[%s1 + $0xc0] sm:$0xff]
  %v47 = vld [vmem:[%s1 + $0xc8] sm:$0xff]
  %v48 = vld [vmem:[%s1 + $0xd0] sm:$0xff]
  %v49 = vld [vmem:[%s1 + $0xd8] sm:$0xff]
  %v50 = vld [vmem:[%s1 + $0xe0] sm:$0xff]
  %v51 = vld [vmem:[%s1 + $0xe8] sm:$0xff]
  %v52 = vld [vmem:[%s1 + $0xf0] sm:$0xff]
  %v53 = vld [vmem:[%s1 + $0xf8] sm:$0xff]
  %v54 = vld [vmem:[%s1 + $0x100] sm:$0xff]
  %v55 = vld [vmem:[%s1 + $0x108] sm:$0xff]
  %v56 = vld [vmem:[%s1 + $0x110] sm:$0xff]
  %v57 = vld [vmem:[%s1 + $0x118] sm:$0xff]
  %v58 = vld [vmem:[%s1 + $0x120] sm:$0xff]
  %v59 = vld [vmem:[%s1 + $0x128] sm:$0xff]
  %v60 = vld [vmem:[%s1 + $0x130] sm:$0xff]
  %v61 = vld [vmem:[%s1 + $0x138] sm:$0xff]
  %v62 = vld [vmem:[%s1 + $0x140] sm:$0xff]
  %v63 = vld [vmem:[%s1 + $0x148] sm:$0xff]
  %v64 = vld [vmem:[%s1 + $0x150] sm:$0xff]
  %v65 = vld [vmem:[%s1 + $0x158] sm:$0xff]
  %v66 = vld [vmem:[%s1 + $0x160] sm:$0xff]
  %v67 = vld [vmem:[%s1 + $0x168] sm:$0xff]
  %v68 = vld [vmem:[%s1 + $0x170] sm:$0xff]
  %v69 = vld [vmem:[%s1 + $0x178] sm:$0xff]
  %v70 = vld [vmem:[%s1 + $0x180] sm:$0xff]
  %v71 = vld [vmem:[%s1 + $0x188] sm:$0xff]
  %v72 = vld [vmem:[%s1 + $0x190] sm:$0xff]
  %v73 = vld [vmem:[%s1 + $0x198] sm:$0xff]
  %v74 = vld [vmem:[%s1 + $0x1a0] sm:$0xff]
  %v75 = vld [vmem:[%s1 + $0x1a8] sm:$0xff]
  %v76 = vld [vmem:[%s1 + $0x1b0] sm:$0xff]
  %v77 = vld [vmem:[%s1 + $0x1b8] sm:$0xff]
  %v78 = vld [vmem:[%s1 + $0x1c0] sm:$0xff]
  %v79 = vld [vmem:[%s1 + $0x1c8] sm:$0xff]
  %v80 = vld [vmem:[%s1 + $0x1d0] sm:$0xff]
  %v81 = vld [vmem:[%s1 + $0x1d8] sm:$0xff]
  %v82 = vld [vmem:[%s1 + $0x1e0] sm:$0xff]
  %v83 = vld [vmem:[%s1 + $0x1e8] sm:$0xff]
  %v84 = vld [vmem:[%s1 + $0x1f0] sm:$0xff]
  %v85 = vld [vmem:[%s1 + $0x1f8] sm:$0xff]
  %v86 = vld [vmem:[%s2] sm:$0xf]
  %v88 = vperm.slane %v86, 0
  %v89 = vperm.slane %v86, 1
  %v90 = vperm.slane %v86, 2
  %v91 = vperm.slane %v86, 3
  %96 = vmatpush.msra.mxu0 %v82
  %97 = vmatpush.msra.mxu0 %v78
  %98 = vmatpush.msra.mxu0 %v74
  %99 = vmatpush.msra.mxu0 %v70
  %100 = vmatpush.msra.mxu0 %v66
  %101 = vmatpush.msra.mxu0 %v62
  %102 = vmatpush.msra.mxu0 %v58
  %103 = vmatpush.msra.mxu0 %v54
  %104 = vmatpush.msra.mxu0 %v50
  %105 = vmatpush.msra.mxu0 %v46
  %106 = vmatpush.msra.mxu0 %v42
  %107 = vmatpush.msra.mxu0 %v38
  %108 = vmatpush.msra.mxu0 %v34
  %109 = vmatpush.msra.mxu0 %v30
  %110 = vmatpush.msra.mxu0 %v26
  %111 = vmatpush.msra.mxu0 %v22
  %112 = vmatmul.f32.gmra.mxu0 %v14
  %v113 = vpop.f32.mrf.mxu0
  %v114 = vadd.f32 %v88, %v113
  %115 = vmatmul.f32.gmra.mxu0 %v15
  %v116 = vpop.f32.mrf.mxu0
  %v117 = vadd.f32 %v88, %v116
  %118 = vmatmul.f32.gmra.mxu0 %v16
  %v119 = vpop.f32.mrf.mxu0
  %v120 = vadd.f32 %v88, %v119
  %121 = vmatmul.f32.gmra.mxu0 %v17
  %v122 = vpop.f32.mrf.mxu0
  %v123 = vadd.f32 %v88, %v122
  %124 = vmatmul.f32.gmra.mxu0 %v18
  %v125 = vpop.f32.mrf.mxu0
  %v126 = vadd.f32 %v88, %v125
  %127 = vmatmul.f32.gmra.mxu0 %v19
  %v128 = vpop.f32.mrf.mxu0
  %v129 = vadd.f32 %v88, %v128
  %130 = vmatmul.f32.gmra.mxu0 %v20
  %v131 = vpop.f32.mrf.mxu0
  %v132 = vadd.f32 %v88, %v131
  %133 = vmatmul.f32.gmra.mxu0 %v21
  %v134 = vpop.f32.mrf.mxu0
  %v135 = vadd.f32 %v88, %v134
  %136 = vdwg.mxu0
  %137 = vmatpush.msra.mxu0 %v83
  %138 = vmatpush.msra.mxu0 %v79
  %139 = vmatpush.msra.mxu0 %v75
  %140 = vmatpush.msra.mxu0 %v71
  %141 = vmatpush.msra.mxu0 %v67
  %142 = vmatpush.msra.mxu0 %v63
  %143 = vmatpush.msra.mxu0 %v59
  %144 = vmatpush.msra.mxu0 %v55
  %145 = vmatpush.msra.mxu0 %v51
  %146 = vmatpush.msra.mxu0 %v47
  %147 = vmatpush.msra.mxu0 %v43
  %148 = vmatpush.msra.mxu0 %v39
  %149 = vmatpush.msra.mxu0 %v35
  %150 = vmatpush.msra.mxu0 %v31
  %151 = vmatpush.msra.mxu0 %v27
  %152 = vmatpush.msra.mxu0 %v23
  %153 = vmatmul.f32.gmra.mxu0 %v14
  %v154 = vpop.f32.mrf.mxu0
  %v155 = vadd.f32 %v89, %v154
  %156 = vmatmul.f32.gmra.mxu0 %v15
  %v157 = vpop.f32.mrf.mxu0
  %v158 = vadd.f32 %v89, %v157
  %159 = vmatmul.f32.gmra.mxu0 %v16
  %v160 = vpop.f32.mrf.mxu0
  %v161 = vadd.f32 %v89, %v160
  %162 = vmatmul.f32.gmra.mxu0 %v17
  %v163 = vpop.f32.mrf.mxu0
  %v164 = vadd.f32 %v89, %v163
  %165 = vmatmul.f32.gmra.mxu0 %v18
  %v166 = vpop.f32.mrf.mxu0
  %v167 = vadd.f32 %v89, %v166
  %168 = vmatmul.f32.gmra.mxu0 %v19
  %v169 = vpop.f32.mrf.mxu0
  %v170 = vadd.f32 %v89, %v169
  %171 = vmatmul.f32.gmra.mxu0 %v20
  %v172 = vpop.f32.mrf.mxu0
  %v173 = vadd.f32 %v89, %v172
  %174 = vmatmul.f32.gmra.mxu0 %v21
  %v175 = vpop.f32.mrf.mxu0
  %v176 = vadd.f32 %v89, %v175
  %177 = vdwg.mxu0
  %178 = vmatpush.msra.mxu0 %v84
  %179 = vmatpush.msra.mxu0 %v80
  %180 = vmatpush.msra.mxu0 %v76
  %181 = vmatpush.msra.mxu0 %v72
  %182 = vmatpush.msra.mxu0 %v68
  %183 = vmatpush.msra.mxu0 %v64
  %184 = vmatpush.msra.mxu0 %v60
  %185 = vmatpush.msra.mxu0 %v56
  %186 = vmatpush.msra.mxu0 %v52
  %187 = vmatpush.msra.mxu0 %v48
  %188 = vmatpush.msra.mxu0 %v44
  %189 = vmatpush.msra.mxu0 %v40
  %190 = vmatpush.msra.mxu0 %v36
  %191 = vmatpush.msra.mxu0 %v32
  %192 = vmatpush.msra.mxu0 %v28
  %193 = vmatpush.msra.mxu0 %v24
  %194 = vmatmul.f32.gmra.mxu0 %v14
  %v195 = vpop.f32.mrf.mxu0
  %v196 = vadd.f32 %v90, %v195
  %197 = vmatmul.f32.gmra.mxu0 %v15
  %v198 = vpop.f32.mrf.mxu0
  %v199 = vadd.f32 %v90, %v198
  %200 = vmatmul.f32.gmra.mxu0 %v16
  %v201 = vpop.f32.mrf.mxu0
  %v202 = vadd.f32 %v90, %v201
  %203 = vmatmul.f32.gmra.mxu0 %v17
  %v204 = vpop.f32.mrf.mxu0
  %v205 = vadd.f32 %v90, %v204
  %206 = vmatmul.f32.gmra.mxu0 %v18
  %v207 = vpop.f32.mrf.mxu0
  %v208 = vadd.f32 %v90, %v207
  %209 = vmatmul.f32.gmra.mxu0 %v19
  %v210 = vpop.f32.mrf.mxu0
  %v211 = vadd.f32 %v90, %v210
  %212 = vmatmul.f32.gmra.mxu0 %v20
  %v213 = vpop.f32.mrf.mxu0
  %v214 = vadd.f32 %v90, %v213
  %215 = vmatmul.f32.gmra.mxu0 %v21
  %v216 = vpop.f32.mrf.mxu0
  %v217 = vadd.f32 %v90, %v216
  %218 = vdwg.mxu0
  %219 = vmatpush.msra.mxu0 %v85
  %220 = vmatpush.msra.mxu0 %v81
  %221 = vmatpush.msra.mxu0 %v77
  %222 = vmatpush.msra.mxu0 %v73
  %223 = vmatpush.msra.mxu0 %v69
  %224 = vmatpush.msra.mxu0 %v65
  %225 = vmatpush.msra.mxu0 %v61
  %226 = vmatpush.msra.mxu0 %v57
  %227 = vmatpush.msra.mxu0 %v53
  %228 = vmatpush.msra.mxu0 %v49
  %229 = vmatpush.msra.mxu0 %v45
  %230 = vmatpush.msra.mxu0 %v41
  %231 = vmatpush.msra.mxu0 %v37
  %232 = vmatpush.msra.mxu0 %v33
  %233 = vmatpush.msra.mxu0 %v29
  %234 = vmatpush.msra.mxu0 %v25
  %235 = vmatmul.f32.gmra.mxu0 %v14
  %v236 = vpop.f32.mrf.mxu0
  %v237 = vadd.f32 %v91, %v236
  %238 = vmatmul.f32.gmra.mxu0 %v15
  %v239 = vpop.f32.mrf.mxu0
  %v240 = vadd.f32 %v91, %v239
  %241 = vmatmul.f32.gmra.mxu0 %v16
  %v242 = vpop.f32.mrf.mxu0
  %v243 = vadd.f32 %v91, %v242
  %244 = vmatmul.f32.gmra.mxu0 %v17
  %v245 = vpop.f32.mrf.mxu0
  %v246 = vadd.f32 %v91, %v245
  %247 = vmatmul.f32.gmra.mxu0 %v18
  %v248 = vpop.f32.mrf.mxu0
  %v249 = vadd.f32 %v91, %v248
  %250 = vmatmul.f32.gmra.mxu0 %v19
  %v251 = vpop.f32.mrf.mxu0
  %v252 = vadd.f32 %v91, %v251
  %253 = vmatmul.f32.gmra.mxu0 %v20
  %v254 = vpop.f32.mrf.mxu0
  %v255 = vadd.f32 %v91, %v254
  %256 = vmatmul.f32.gmra.mxu0 %v21
  %v257 = vpop.f32.mrf.mxu0
  %v258 = vadd.f32 %v91, %v257
  %259 = vdwg.mxu0
  %260 = vst [vmem:[%s3] sm:$0xff] %v114
  %261 = vst [vmem:[%s3 + $0x8] sm:$0xff] %v155
  %262 = vst [vmem:[%s3 + $0x10] sm:$0xff] %v196
  %263 = vst [vmem:[%s3 + $0x18] sm:$0xff] %v237
  %264 = vst [vmem:[%s3 + $0x20] sm:$0xff] %v117
  %265 = vst [vmem:[%s3 + $0x28] sm:$0xff] %v158
  %266 = vst [vmem:[%s3 + $0x30] sm:$0xff] %v199
  %267 = vst [vmem:[%s3 + $0x38] sm:$0xff] %v240
  %268 = vst [vmem:[%s3 + $0x40] sm:$0xff] %v120
  %269 = vst [vmem:[%s3 + $0x48] sm:$0xff] %v161
  %270 = vst [vmem:[%s3 + $0x50] sm:$0xff] %v202
  %271 = vst [vmem:[%s3 + $0x58] sm:$0xff] %v243
  %272 = vst [vmem:[%s3 + $0x60] sm:$0xff] %v123
  %273 = vst [vmem:[%s3 + $0x68] sm:$0xff] %v164
  %274 = vst [vmem:[%s3 + $0x70] sm:$0xff] %v205
  %275 = vst [vmem:[%s3 + $0x78] sm:$0xff] %v246
  %276 = vst [vmem:[%s3 + $0x80] sm:$0xff] %v126
  %277 = vst [vmem:[%s3 + $0x88] sm:$0xff] %v167
  %278 = vst [vmem:[%s3 + $0x90] sm:$0xff] %v208
  %279 = vst [vmem:[%s3 + $0x98] sm:$0xff] %v249
  %280 = vst [vmem:[%s3 + $0xa0] sm:$0xff] %v129
  %281 = vst [vmem:[%s3 + $0xa8] sm:$0xff] %v170
  %282 = vst [vmem:[%s3 + $0xb0] sm:$0xff] %v211
  %283 = vst [vmem:[%s3 + $0xb8] sm:$0xff] %v252
  %284 = vst [vmem:[%s3 + $0xc0] sm:$0xff] %v132
  %285 = vst [vmem:[%s3 + $0xc8] sm:$0xff] %v173
  %286 = vst [vmem:[%s3 + $0xd0] sm:$0xff] %v214
  %287 = vst [vmem:[%s3 + $0xd8] sm:$0xff] %v255
  %288 = vst [vmem:[%s3 + $0xe0] sm:$0xff] %v135
  %289 = vst [vmem:[%s3 + $0xe8] sm:$0xff] %v176
  %290 = vst [vmem:[%s3 + $0xf0] sm:$0xff] %v217
  %291 = vst [vmem:[%s3 + $0xf8] sm:$0xff] %v258
  // Predicated region
  $region14: #{poem_rnn_forward.5} parent=0 // pred_check
    _
  $region15: #{poem_rnn_forward.5} parent=0 // pred_check_branch
    %293 = sbr.rel (0) target = $region17
  $region16: #{poem_rnn_forward.5} parent=0 // pred_region
    _
  $region17: #{poem_rnn_forward.5} parent=0 // pred_fallthru
    _
  // Predicated region
  $region18: #{poem_rnn_forward.5} parent=0 // pred_check
    _
  $region19: #{poem_rnn_forward.5} parent=0 // pred_check_branch
    %295 = sbr.rel (0) target = $region21
  $region20: #{poem_rnn_forward.5} parent=0 // pred_region
    _
  $region21: #{poem_rnn_forward.5} parent=0 // pred_fallthru
    _

// kernel: poem_rnn_forward.4
$region0: #{poem_rnn_forward.4}
  #allocation0 [shape = 'u32[]', space=smem, size = 0x4, offset = 0x4, fixed_abs, tag = 'smem constant byte address 0x4 - core index']
  #allocation1 [shape = 'u32[72,128]{1,0:T(1,128)}', space=vmem, size = 0x9000, scoped, tag = 'internal scratch']
  #allocation2 [shape = 'f32[8,128]{1,0:T(8,128)}', space=vmem, size = 0x1000, scoped, tag = 'scratch operand']
  #allocation3 [shape = 'f32[8,128]{1,0:T(8,128)}', space=vmem, size = 0x1000, scoped, tag = 'scratch operand']
  %s0 = inlined_call_operand.vmem [shape: f32[8,8,512], index: 0, kind: input, shape index: {}]
  %s1 = inlined_call_operand.vmem [shape: f32[128,512], index: 1, kind: input, shape index: {}]
  %s2 = inlined_call_operand.vmem [shape: f32[8,128], index: 2, kind: input, shape index: {}, may-alias: {2,3}]
  %s3 = inlined_call_operand.vmem [shape: f32[8,128], index: 3, kind: input, shape index: {}, may-alias: {2,3}]
  %s4 = inlined_call_operand.vmem [shape: f32[8,8,128], index: 4, kind: output, shape index: {0}]
  %s5 = inlined_call_operand.vmem [shape: f32[8,128], index: 5, kind: output, shape index: {1}]
  %s6 = inlined_call_operand.vmem [shape: f32[8,128], index: 6, kind: output, shape index: {2}]
  %7 = xla_tuple %s4, %s5, %s6
  %s8 = sld [smem:[#allocation0]]
  $region46: #{poem_rnn_forward.4} parent=0
    _
  %s10 = ssub.s32 1, %s8
  %s11 = scalar_select 0, %s10, %s8
  // Predicated region
  $region2: #{poem_rnn_forward.4} parent=0 // pred_check
    _
  $region3: #{poem_rnn_forward.4} parent=0 // pred_check_branch
    %13 = sbr.rel (0) target = $region5
  $region4: #{poem_rnn_forward.4} parent=0 // pred_region
    _
  $region5: #{poem_rnn_forward.4} parent=0 // pred_fallthru
    _
  // Predicated region
  $region6: #{poem_rnn_forward.4} parent=0 // pred_check
    _
  $region7: #{poem_rnn_forward.4} parent=0 // pred_check_branch
    %15 = sbr.rel (0) target = $region9
  $region8: #{poem_rnn_forward.4} parent=0 // pred_region
    _
  $region9: #{poem_rnn_forward.4} parent=0 // pred_fallthru
    _
  // Predicated region
  $region10: #{poem_rnn_forward.4} parent=0 // pred_check
    _
  $region11: #{poem_rnn_forward.4} parent=0 // pred_check_branch
    %17 = sbr.rel (0) target = $region13
  $region12: #{poem_rnn_forward.4} parent=0 // pred_region
    _
  $region13: #{poem_rnn_forward.4} parent=0 // pred_fallthru
    _
  // Predicated region
  $region14: #{poem_rnn_forward.4} parent=0 // pred_check
    _
  $region15: #{poem_rnn_forward.4} parent=0 // pred_check_branch
    %19 = sbr.rel (0) target = $region17
  $region16: #{poem_rnn_forward.4} parent=0 // pred_region
    _
  $region17: #{poem_rnn_forward.4} parent=0 // pred_fallthru
    _
  %p20 = scmp.eq.s32.totalorder 0, 0
  // Predicated region
  $region18: #{poem_rnn_forward.4} parent=0 // pred_check
    %p21 = pneg %p20
  $region19: #{poem_rnn_forward.4} parent=0 // pred_check_branch
    %23 = sbr.rel (%p21) target = $region21
  $region20: #{poem_rnn_forward.4} parent=0 // pred_region
    %v24 = vld [vmem:[%s2] sm:$0xff]
    %25 = vst [vmem:[#allocation2] sm:$0xff] %v24
    %v26 = vld [vmem:[%s3] sm:$0xff]
    %27 = vst [vmem:[#allocation3] sm:$0xff] %v26
  $region21: #{poem_rnn_forward.4} parent=0 // pred_fallthru
    _
  %v28 = vld [vmem:[%s1] sm:$0xff]
  %v29 = vld [vmem:[%s1 + $0x8] sm:$0xff]
  %v30 = vld [vmem:[%s1 + $0x10] sm:$0xff]
  %v31 = vld [vmem:[%s1 + $0x18] sm:$0xff]
  %v32 = vld [vmem:[%s1 + $0x20] sm:$0xff]
  %v33 = vld [vmem:[%s1 + $0x28] sm:$0xff]
  %v34 = vld [vmem:[%s1 + $0x30] sm:$0xff]
  %v35 = vld [vmem:[%s1 + $0x38] sm:$0xff]
  %v36 = vld [vmem:[%s1 + $0x40] sm:$0xff]
  %v37 = vld [vmem:[%s1 + $0x48] sm:$0xff]
  %v38 = vld [vmem:[%s1 + $0x50] sm:$0xff]
  %v39 = vld [vmem:[%s1 + $0x58] sm:$0xff]
  %v40 = vld [vmem:[%s1 + $0x60] sm:$0xff]
  %v41 = vld [vmem:[%s1 + $0x68] sm:$0xff]
  %v42 = vld [vmem:[%s1 + $0x70] sm:$0xff]
  %v43 = vld [vmem:[%s1 + $0x78] sm:$0xff]
  %v44 = vld [vmem:[%s1 + $0x80] sm:$0xff]
  %v45 = vld [vmem:[%s1 + $0x88] sm:$0xff]
  %v46 = vld [vmem:[%s1 + $0x90] sm:$0xff]
  %v47 = vld [vmem:[%s1 + $0x98] sm:$0xff]
  %v48 = vld [vmem:[%s1 + $0xa0] sm:$0xff]
  %v49 = vld [vmem:[%s1 + $0xa8] sm:$0xff]
  %v50 = vld [vmem:[%s1 + $0xb0] sm:$0xff]
  %v51 = vld [vmem:[%s1 + $0xb8] sm:$0xff]
  %v52 = vld [vmem:[%s1 + $0xc0] sm:$0xff]
  %v53 = vld [vmem:[%s1 + $0xc8] sm:$0xff]
  %v54 = vld [vmem:[%s1 + $0xd0] sm:$0xff]
  %v55 = vld [vmem:[%s1 + $0xd8] sm:$0xff]
  %v56 = vld [vmem:[%s1 + $0xe0] sm:$0xff]
  %v57 = vld [vmem:[%s1 + $0xe8] sm:$0xff]
  %v58 = vld [vmem:[%s1 + $0xf0] sm:$0xff]
  %v59 = vld [vmem:[%s1 + $0xf8] sm:$0xff]
  %v60 = vld [vmem:[%s1 + $0x100] sm:$0xff]
  %v61 = vld [vmem:[%s1 + $0x108] sm:$0xff]
  %v62 = vld [vmem:[%s1 + $0x110] sm:$0xff]
  %v63 = vld [vmem:[%s1 + $0x118] sm:$0xff]
  %v64 = vld [vmem:[%s1 + $0x120] sm:$0xff]
  %v65 = vld [vmem:[%s1 + $0x128] sm:$0xff]
  %v66 = vld [vmem:[%s1 + $0x130] sm:$0xff]
  %v67 = vld [vmem:[%s1 + $0x138] sm:$0xff]
  %v68 = vld [vmem:[%s1 + $0x140] sm:$0xff]
  %v69 = vld [vmem:[%s1 + $0x148] sm:$0xff]
  %v70 = vld [vmem:[%s1 + $0x150] sm:$0xff]
  %v71 = vld [vmem:[%s1 + $0x158] sm:$0xff]
  %v72 = vld [vmem:[%s1 + $0x160] sm:$0xff]
  %v73 = vld [vmem:[%s1 + $0x168] sm:$0xff]
  %v74 = vld [vmem:[%s1 + $0x170] sm:$0xff]
  %v75 = vld [vmem:[%s1 + $0x178] sm:$0xff]
  %v76 = vld [vmem:[%s1 + $0x180] sm:$0xff]
  %v77 = vld [vmem:[%s1 + $0x188] sm:$0xff]
  %v78 = vld [vmem:[%s1 + $0x190] sm:$0xff]
  %v79 = vld [vmem:[%s1 + $0x198] sm:$0xff]
  %v80 = vld [vmem:[%s1 + $0x1a0] sm:$0xff]
  %v81 = vld [vmem:[%s1 + $0x1a8] sm:$0xff]
  %v82 = vld [vmem:[%s1 + $0x1b0] sm:$0xff]
  %v83 = vld [vmem:[%s1 + $0x1b8] sm:$0xff]
  %v84 = vld [vmem:[%s1 + $0x1c0] sm:$0xff]
  %v85 = vld [vmem:[%s1 + $0x1c8] sm:$0xff]
  %v86 = vld [vmem:[%s1 + $0x1d0] sm:$0xff]
  %v87 = vld [vmem:[%s1 + $0x1d8] sm:$0xff]
  %v88 = vld [vmem:[%s1 + $0x1e0] sm:$0xff]
  %v89 = vld [vmem:[%s1 + $0x1e8] sm:$0xff]
  %v90 = vld [vmem:[%s1 + $0x1f0] sm:$0xff]
  %v91 = vld [vmem:[%s1 + $0x1f8] sm:$0xff]
  %v92 = vld [vmem:[#allocation2] sm:$0xff]
  %v93 = vld [vmem:[#allocation3] sm:$0xff]
  %v94 = vld [vmem:[%s0] sm:$0xff]
  %v95 = vld [vmem:[%s0 + $0x8] sm:$0xff]
  %v96 = vld [vmem:[%s0 + $0x10] sm:$0xff]
  %v97 = vld [vmem:[%s0 + $0x18] sm:$0xff]
  %98 = vmatpush.msra.mxu0 %v88
  %99 = vmatpush.msra.mxu0 %v84
  %100 = vmatpush.msra.mxu0 %v80
  %101 = vmatpush.msra.mxu0 %v76
  %102 = vmatpush.msra.mxu0 %v72
  %103 = vmatpush.msra.mxu0 %v68
  %104 = vmatpush.msra.mxu0 %v64
  %105 = vmatpush.msra.mxu0 %v60
  %106 = vmatpush.msra.mxu0 %v56
  %107 = vmatpush.msra.mxu0 %v52
  %108 = vmatpush.msra.mxu0 %v48
  %109 = vmatpush.msra.mxu0 %v44
  %110 = vmatpush.msra.mxu0 %v40
  %111 = vmatpush.msra.mxu0 %v36
  %112 = vmatpush.msra.mxu0 %v32
  %113 = vmatpush.msra.mxu0 %v28
  %114 = vmatmul.f32.gmra.mxu0 %v92
  %v115 = vpop.f32.mrf.mxu0
  %v116 = vadd.f32 0.0, %v115
  %117 = vdwg.mxu0
  %118 = vmatpush.msra.mxu0 %v89
  %119 = vmatpush.msra.mxu0 %v85
  %120 = vmatpush.msra.mxu0 %v81
  %121 = vmatpush.msra.mxu0 %v77
  %122 = vmatpush.msra.mxu0 %v73
  %123 = vmatpush.msra.mxu0 %v69
  %124 = vmatpush.msra.mxu0 %v65
  %125 = vmatpush.msra.mxu0 %v61
  %126 = vmatpush.msra.mxu0 %v57
  %127 = vmatpush.msra.mxu0 %v53
  %128 = vmatpush.msra.mxu0 %v49
  %129 = vmatpush.msra.mxu0 %v45
  %130 = vmatpush.msra.mxu0 %v41
  %131 = vmatpush.msra.mxu0 %v37
  %132 = vmatpush.msra.mxu0 %v33
  %133 = vmatpush.msra.mxu0 %v29
  %134 = vmatmul.f32.gmra.mxu0 %v92
  %v135 = vpop.f32.mrf.mxu0
  %v136 = vadd.f32 0.0, %v135
  %137 = vdwg.mxu0
  %138 = vmatpush.msra.mxu0 %v90
  %139 = vmatpush.msra.mxu0 %v86
  %140 = vmatpush.msra.mxu0 %v82
  %141 = vmatpush.msra.mxu0 %v78
  %142 = vmatpush.msra.mxu0 %v74
  %143 = vmatpush.msra.mxu0 %v70
  %144 = vmatpush.msra.mxu0 %v66
  %145 = vmatpush.msra.mxu0 %v62
  %146 = vmatpush.msra.mxu0 %v58
  %147 = vmatpush.msra.mxu0 %v54
  %148 = vmatpush.msra.mxu0 %v50
  %149 = vmatpush.msra.mxu0 %v46
  %150 = vmatpush.msra.mxu0 %v42
  %151 = vmatpush.msra.mxu0 %v38
  %152 = vmatpush.msra.mxu0 %v34
  %153 = vmatpush.msra.mxu0 %v30
  %154 = vmatmul.f32.gmra.mxu0 %v92
  %v155 = vpop.f32.mrf.mxu0
  %v156 = vadd.f32 0.0, %v155
  %157 = vdwg.mxu0
  %158 = vmatpush.msra.mxu0 %v91
  %159 = vmatpush.msra.mxu0 %v87
  %160 = vmatpush.msra.mxu0 %v83
  %161 = vmatpush.msra.mxu0 %v79
  %162 = vmatpush.msra.mxu0 %v75
  %163 = vmatpush.msra.mxu0 %v71
  %164 = vmatpush.msra.mxu0 %v67
  %165 = vmatpush.msra.mxu0 %v63
  %166 = vmatpush.msra.mxu0 %v59
  %167 = vmatpush.msra.mxu0 %v55
  %168 = vmatpush.msra.mxu0 %v51
  %169 = vmatpush.msra.mxu0 %v47
  %170 = vmatpush.msra.mxu0 %v43
  %171 = vmatpush.msra.mxu0 %v39
  %172 = vmatpush.msra.mxu0 %v35
  %173 = vmatpush.msra.mxu0 %v31
  %174 = vmatmul.f32.gmra.mxu0 %v92
  %v175 = vpop.f32.mrf.mxu0
  %v176 = vadd.f32 0.0, %v175
  %177 = vdwg.mxu0
  %v178 = vadd.f32 %v94, %v116
  %v179 = vadd.f32 %v95, %v136
  %v180 = vadd.f32 %v96, %v156
  %v181 = vadd.f32 %v97, %v176
  %v182 = vxor.u32 %v178, 2147483648
  %v183 = vxor.u32 %v179, 2147483648
  %v184 = vxor.u32 %v180, 2147483648
  %v185 = vmul.f32 %v182, 1.442695
  %v186 = vpow.pop %v185
  %v187 = vmul.f32 %v183, 1.442695
  %v188 = vpow.pop %v187
  %v189 = vmul.f32 %v184, 1.442695
  %v190 = vpow.pop %v189
  %v191 = vadd.f32 %v186, 1.0
  %v192 = vadd.f32 %v188, 1.0
  %v193 = vadd.f32 %v190, 1.0
  %v194 = vrcp.pop %v191
  %v195 = vmul.f32 %v191, %v194
  %v196 = vsub.f32 1.0, %v195
  %v197 = vmul.f32 %v194, %v196
  %v198 = vadd.f32 %v194, %v197
  %vm199 = vweird.f32 %v191
  %vm200 = vweird.f32 %v194
  %vm201 = vmor %vm199, %vm200
  %v202 = vsel %vm201, %v194, %v198
  %v203 = vand.u32 2147483647, %v191
  %vm204 = vcmp.eq.f32.partialorder %v203, 8.507059e+37
  %v205 = vand.u32 %v191, 2147483648
  %v206 = vor.u32 1.1754944e-38, %v205
  %v207 = vsel %vm204, %v206, %v202
  %v208 = vmul.f32 1.0, %v207
  %v209 = vrcp.pop %v192
  %v210 = vmul.f32 %v192, %v209
  %v211 = vsub.f32 1.0, %v210
  %v212 = vmul.f32 %v209, %v211
  %v213 = vadd.f32 %v209, %v212
  %vm214 = vweird.f32 %v192
  %vm215 = vweird.f32 %v209
  %vm216 = vmor %vm214, %vm215
  %v217 = vsel %vm216, %v209, %v213
  %v218 = vand.u32 2147483647, %v192
  %vm219 = vcmp.eq.f32.partialorder %v218, 8.507059e+37
  %v220 = vand.u32 %v192, 2147483648
  %v221 = vor.u32 1.1754944e-38, %v220
  %v222 = vsel %vm219, %v221, %v217
  %v223 = vmul.f32 1.0, %v222
  %v224 = vrcp.pop %v193
  %v225 = vmul.f32 %v193, %v224
  %v226 = vsub.f32 1.0, %v225
  %v227 = vmul.f32 %v224, %v226
  %v228 = vadd.f32 %v224, %v227
  %vm229 = vweird.f32 %v193
  %vm230 = vweird.f32 %v224
  %vm231 = vmor %vm229, %vm230
  %v232 = vsel %vm231, %v224, %v228
  %v233 = vand.u32 2147483647, %v193
  %vm234 = vcmp.eq.f32.partialorder %v233, 8.507059e+37
  %v235 = vand.u32 %v193, 2147483648
  %v236 = vor.u32 1.1754944e-38, %v235
  %v237 = vsel %vm234, %v236, %v232
  %v238 = vmul.f32 1.0, %v237
  %v239 = vtanh.pop %v181
  %v240 = vmul.f32 %v223, %v93
  %v241 = vmul.f32 %v208, %v239
  %v242 = vadd.f32 %v240, %v241
  %v243 = vtanh.pop %v242
  %v244 = vmul.f32 %v238, %v243
  %245 = vst [vmem:[%s4] sm:$0xff] %v244
  %s246 = scalar_lea.vmem %s0, 32
  %v247 = vld [vmem:[%s246] sm:$0xff]
  %v248 = vld [vmem:[%s246 + $0x8] sm:$0xff]
  %v249 = vld [vmem:[%s246 + $0x10] sm:$0xff]
  %v250 = vld [vmem:[%s246 + $0x18] sm:$0xff]
  %251 = vmatpush.msra.mxu0 %v88
  %252 = vmatpush.msra.mxu0 %v84
  %253 = vmatpush.msra.mxu0 %v80
  %254 = vmatpush.msra.mxu0 %v76
  %255 = vmatpush.msra.mxu0 %v72
  %256 = vmatpush.msra.mxu0 %v68
  %257 = vmatpush.msra.mxu0 %v64
  %258 = vmatpush.msra.mxu0 %v60
  %259 = vmatpush.msra.mxu0 %v56
  %260 = vmatpush.msra.mxu0 %v52
  %261 = vmatpush.msra.mxu0 %v48
  %262 = vmatpush.msra.mxu0 %v44
  %263 = vmatpush.msra.mxu0 %v40
  %264 = vmatpush.msra.mxu0 %v36
  %265 = vmatpush.msra.mxu0 %v32
  %266 = vmatpush.msra.mxu0 %v28
  %267 = vmatmul.f32.gmra.mxu0 %v244
  %v268 = vpop.f32.mrf.mxu0
  %v269 = vadd.f32 0.0, %v268
  %270 = vdwg.mxu0
  %271 = vmatpush.msra.mxu0 %v89
  %272 = vmatpush.msra.mxu0 %v85
  %273 = vmatpush.msra.mxu0 %v81
  %274 = vmatpush.msra.mxu0 %v77
  %275 = vmatpush.msra.mxu0 %v73
  %276 = vmatpush.msra.mxu0 %v69
  %277 = vmatpush.msra.mxu0 %v65
  %278 = vmatpush.msra.mxu0 %v61
  %279 = vmatpush.msra.mxu0 %v57
  %280 = vmatpush.msra.mxu0 %v53
  %281 = vmatpush.msra.mxu0 %v49
  %282 = vmatpush.msra.mxu0 %v45
  %283 = vmatpush.msra.mxu0 %v41
  %284 = vmatpush.msra.mxu0 %v37
  %285 = vmatpush.msra.mxu0 %v33
  %286 = vmatpush.msra.mxu0 %v29
  %287 = vmatmul.f32.gmra.mxu0 %v244
  %v288 = vpop.f32.mrf.mxu0
  %v289 = vadd.f32 0.0, %v288
  %290 = vdwg.mxu0
  %291 = vmatpush.msra.mxu0 %v90
  %292 = vmatpush.msra.mxu0 %v86
  %293 = vmatpush.msra.mxu0 %v82
  %294 = vmatpush.msra.mxu0 %v78
  %295 = vmatpush.msra.mxu0 %v74
  %296 = vmatpush.msra.mxu0 %v70
  %297 = vmatpush.msra.mxu0 %v66
  %298 = vmatpush.msra.mxu0 %v62
  %299 = vmatpush.msra.mxu0 %v58
  %300 = vmatpush.msra.mxu0 %v54
  %301 = vmatpush.msra.mxu0 %v50
  %302 = vmatpush.msra.mxu0 %v46
  %303 = vmatpush.msra.mxu0 %v42
  %304 = vmatpush.msra.mxu0 %v38
  %305 = vmatpush.msra.mxu0 %v34
  %306 = vmatpush.msra.mxu0 %v30
  %307 = vmatmul.f32.gmra.mxu0 %v244
  %v308 = vpop.f32.mrf.mxu0
  %v309 = vadd.f32 0.0, %v308
  %310 = vdwg.mxu0
  %311 = vmatpush.msra.mxu0 %v91
  %312 = vmatpush.msra.mxu0 %v87
  %313 = vmatpush.msra.mxu0 %v83
  %314 = vmatpush.msra.mxu0 %v79
  %315 = vmatpush.msra.mxu0 %v75
  %316 = vmatpush.msra.mxu0 %v71
  %317 = vmatpush.msra.mxu0 %v67
  %318 = vmatpush.msra.mxu0 %v63
  %319 = vmatpush.msra.mxu0 %v59
  %320 = vmatpush.msra.mxu0 %v55
  %321 = vmatpush.msra.mxu0 %v51
  %322 = vmatpush.msra.mxu0 %v47
  %323 = vmatpush.msra.mxu0 %v43
  %324 = vmatpush.msra.mxu0 %v39
  %325 = vmatpush.msra.mxu0 %v35
  %326 = vmatpush.msra.mxu0 %v31
  %327 = vmatmul.f32.gmra.mxu0 %v244
  %v328 = vpop.f32.mrf.mxu0
  %v329 = vadd.f32 0.0, %v328
  %330 = vdwg.mxu0
  %v331 = vadd.f32 %v247, %v269
  %v332 = vadd.f32 %v248, %v289
  %v333 = vadd.f32 %v249, %v309
  %v334 = vadd.f32 %v250, %v329
  %v335 = vxor.u32 %v331, 2147483648
  %v336 = vxor.u32 %v332, 2147483648
  %v337 = vxor.u32 %v333, 2147483648
  %v338 = vmul.f32 %v335, 1.442695
  %v339 = vpow.pop %v338
  %v340 = vmul.f32 %v336, 1.442695
  %v341 = vpow.pop %v340
  %v342 = vmul.f32 %v337, 1.442695
  %v343 = vpow.pop %v342
  %v344 = vadd.f32 %v339, 1.0
  %v345 = vadd.f32 %v341, 1.0
  %v346 = vadd.f32 %v343, 1.0
  %v347 = vrcp.pop %v344
  %v348 = vmul.f32 %v344, %v347
  %v349 = vsub.f32 1.0, %v348
  %v350 = vmul.f32 %v347, %v349
  %v351 = vadd.f32 %v347, %v350
  %vm352 = vweird.f32 %v344
  %vm353 = vweird.f32 %v347
  %vm354 = vmor %vm352, %vm353
  %v355 = vsel %vm354, %v347, %v351
  %v356 = vand.u32 2147483647, %v344
  %vm357 = vcmp.eq.f32.partialorder %v356, 8.507059e+37
  %v358 = vand.u32 %v344, 2147483648
  %v359 = vor.u32 1.1754944e-38, %v358
  %v360 = vsel %vm357, %v359, %v355
  %v361 = vmul.f32 1.0, %v360
  %v362 = vrcp.pop %v345
  %v363 = vmul.f32 %v345, %v362
  %v364 = vsub.f32 1.0, %v363
  %v365 = vmul.f32 %v362, %v364
  %v366 = vadd.f32 %v362, %v365
  %vm367 = vweird.f32 %v345
  %vm368 = vweird.f32 %v362
  %vm369 = vmor %vm367, %vm368
  %v370 = vsel %vm369, %v362, %v366
  %v371 = vand.u32 2147483647, %v345
  %vm372 = vcmp.eq.f32.partialorder %v371, 8.507059e+37
  %v373 = vand.u32 %v345, 2147483648
  %v374 = vor.u32 1.1754944e-38, %v373
  %v375 = vsel %vm372, %v374, %v370
  %v376 = vmul.f32 1.0, %v375
  %v377 = vrcp.pop %v346
  %v378 = vmul.f32 %v346, %v377
  %v379 = vsub.f32 1.0, %v378
  %v380 = vmul.f32 %v377, %v379
  %v381 = vadd.f32 %v377, %v380
  %vm382 = vweird.f32 %v346
  %vm383 = vweird.f32 %v377
  %vm384 = vmor %vm382, %vm383
  %v385 = vsel %vm384, %v377, %v381
  %v386 = vand.u32 2147483647, %v346
  %vm387 = vcmp.eq.f32.partialorder %v386, 8.507059e+37
  %v388 = vand.u32 %v346, 2147483648
  %v389 = vor.u32 1.1754944e-38, %v388
  %v390 = vsel %vm387, %v389, %v385
  %v391 = vmul.f32 1.0, %v390
  %v392 = vtanh.pop %v334
  %v393 = vmul.f32 %v376, %v242
  %v394 = vmul.f32 %v361, %v392
  %v395 = vadd.f32 %v393, %v394
  %v396 = vtanh.pop %v395
  %v397 = vmul.f32 %v391, %v396
  %s398 = scalar_lea.vmem %s4, 8
  %399 = vst [vmem:[%s398] sm:$0xff] %v397
  %s400 = scalar_lea.vmem %s0, 64
  %v401 = vld [vmem:[%s400] sm:$0xff]
  %v402 = vld [vmem:[%s400 + $0x8] sm:$0xff]
  %v403 = vld [vmem:[%s400 + $0x10] sm:$0xff]
  %v404 = vld [vmem:[%s400 + $0x18] sm:$0xff]
  %405 = vmatpush.msra.mxu0 %v88
  %406 = vmatpush.msra.mxu0 %v84
  %407 = vmatpush.msra.mxu0 %v80
  %408 = vmatpush.msra.mxu0 %v76
  %409 = vmatpush.msra.mxu0 %v72
  %410 = vmatpush.msra.mxu0 %v68
  %411 = vmatpush.msra.mxu0 %v64
  %412 = vmatpush.msra.mxu0 %v60
  %413 = vmatpush.msra.mxu0 %v56
  %414 = vmatpush.msra.mxu0 %v52
  %415 = vmatpush.msra.mxu0 %v48
  %416 = vmatpush.msra.mxu0 %v44
  %417 = vmatpush.msra.mxu0 %v40
  %418 = vmatpush.msra.mxu0 %v36
  %419 = vmatpush.msra.mxu0 %v32
  %420 = vmatpush.msra.mxu0 %v28
  %421 = vmatmul.f32.gmra.mxu0 %v397
  %v422 = vpop.f32.mrf.mxu0
  %v423 = vadd.f32 0.0, %v422
  %424 = vdwg.mxu0
  %425 = vmatpush.msra.mxu0 %v89
  %426 = vmatpush.msra.mxu0 %v85
  %427 = vmatpush.msra.mxu0 %v81
  %428 = vmatpush.msra.mxu0 %v77
  %429 = vmatpush.msra.mxu0 %v73
  %430 = vmatpush.msra.mxu0 %v69
  %431 = vmatpush.msra.mxu0 %v65
  %432 = vmatpush.msra.mxu0 %v61
  %433 = vmatpush.msra.mxu0 %v57
  %434 = vmatpush.msra.mxu0 %v53
  %435 = vmatpush.msra.mxu0 %v49
  %436 = vmatpush.msra.mxu0 %v45
  %437 = vmatpush.msra.mxu0 %v41
  %438 = vmatpush.msra.mxu0 %v37
  %439 = vmatpush.msra.mxu0 %v33
  %440 = vmatpush.msra.mxu0 %v29
  %441 = vmatmul.f32.gmra.mxu0 %v397
  %v442 = vpop.f32.mrf.mxu0
  %v443 = vadd.f32 0.0, %v442
  %444 = vdwg.mxu0
  %445 = vmatpush.msra.mxu0 %v90
  %446 = vmatpush.msra.mxu0 %v86
  %447 = vmatpush.msra.mxu0 %v82
  %448 = vmatpush.msra.mxu0 %v78
  %449 = vmatpush.msra.mxu0 %v74
  %450 = vmatpush.msra.mxu0 %v70
  %451 = vmatpush.msra.mxu0 %v66
  %452 = vmatpush.msra.mxu0 %v62
  %453 = vmatpush.msra.mxu0 %v58
  %454 = vmatpush.msra.mxu0 %v54
  %455 = vmatpush.msra.mxu0 %v50
  %456 = vmatpush.msra.mxu0 %v46
  %457 = vmatpush.msra.mxu0 %v42
  %458 = vmatpush.msra.mxu0 %v38
  %459 = vmatpush.msra.mxu0 %v34
  %460 = vmatpush.msra.mxu0 %v30
  %461 = vmatmul.f32.gmra.mxu0 %v397
  %v462 = vpop.f32.mrf.mxu0
  %v463 = vadd.f32 0.0, %v462
  %464 = vdwg.mxu0
  %465 = vmatpush.msra.mxu0 %v91
  %466 = vmatpush.msra.mxu0 %v87
  %467 = vmatpush.msra.mxu0 %v83
  %468 = vmatpush.msra.mxu0 %v79
  %469 = vmatpush.msra.mxu0 %v75
  %470 = vmatpush.msra.mxu0 %v71
  %471 = vmatpush.msra.mxu0 %v67
  %472 = vmatpush.msra.mxu0 %v63
  %473 = vmatpush.msra.mxu0 %v59
  %474 = vmatpush.msra.mxu0 %v55
  %475 = vmatpush.msra.mxu0 %v51
  %476 = vmatpush.msra.mxu0 %v47
  %477 = vmatpush.msra.mxu0 %v43
  %478 = vmatpush.msra.mxu0 %v39
  %479 = vmatpush.msra.mxu0 %v35
  %480 = vmatpush.msra.mxu0 %v31
  %481 = vmatmul.f32.gmra.mxu0 %v397
  %v482 = vpop.f32.mrf.mxu0
  %v483 = vadd.f32 0.0, %v482
  %484 = vdwg.mxu0
  %v485 = vadd.f32 %v401, %v423
  %v486 = vadd.f32 %v402, %v443
  %v487 = vadd.f32 %v403, %v463
  %v488 = vadd.f32 %v404, %v483
  %v489 = vxor.u32 %v485, 2147483648
  %v490 = vxor.u32 %v486, 2147483648
  %v491 = vxor.u32 %v487, 2147483648
  %v492 = vmul.f32 %v489, 1.442695
  %v493 = vpow.pop %v492
  %v494 = vmul.f32 %v490, 1.442695
  %v495 = vpow.pop %v494
  %v496 = vmul.f32 %v491, 1.442695
  %v497 = vpow.pop %v496
  %v498 = vadd.f32 %v493, 1.0
  %v499 = vadd.f32 %v495, 1.0
  %v500 = vadd.f32 %v497, 1.0
  %v501 = vrcp.pop %v498
  %v502 = vmul.f32 %v498, %v501
  %v503 = vsub.f32 1.0, %v502
  %v504 = vmul.f32 %v501, %v503
  %v505 = vadd.f32 %v501, %v504
  %vm506 = vweird.f32 %v498
  %vm507 = vweird.f32 %v501
  %vm508 = vmor %vm506, %vm507
  %v509 = vsel %vm508, %v501, %v505
  %v510 = vand.u32 2147483647, %v498
  %vm511 = vcmp.eq.f32.partialorder %v510, 8.507059e+37
  %v512 = vand.u32 %v498, 2147483648
  %v513 = vor.u32 1.1754944e-38, %v512
  %v514 = vsel %vm511, %v513, %v509
  %v515 = vmul.f32 1.0, %v514
  %v516 = vrcp.pop %v499
  %v517 = vmul.f32 %v499, %v516
  %v518 = vsub.f32 1.0, %v517
  %v519 = vmul.f32 %v516, %v518
  %v520 = vadd.f32 %v516, %v519
  %vm521 = vweird.f32 %v499
  %vm522 = vweird.f32 %v516
  %vm523 = vmor %vm521, %vm522
  %v524 = vsel %vm523, %v516, %v520
  %v525 = vand.u32 2147483647, %v499
  %vm526 = vcmp.eq.f32.partialorder %v525, 8.507059e+37
  %v527 = vand.u32 %v499, 2147483648
  %v528 = vor.u32 1.1754944e-38, %v527
  %v529 = vsel %vm526, %v528, %v524
  %v530 = vmul.f32 1.0, %v529
  %v531 = vrcp.pop %v500
  %v532 = vmul.f32 %v500, %v531
  %v533 = vsub.f32 1.0, %v532
  %v534 = vmul.f32 %v531, %v533
  %v535 = vadd.f32 %v531, %v534
  %vm536 = vweird.f32 %v500
  %vm537 = vweird.f32 %v531
  %vm538 = vmor %vm536, %vm537
  %v539 = vsel %vm538, %v531, %v535
  %v540 = vand.u32 2147483647, %v500
  %vm541 = vcmp.eq.f32.partialorder %v540, 8.507059e+37
  %v542 = vand.u32 %v500, 2147483648
  %v543 = vor.u32 1.1754944e-38, %v542
  %v544 = vsel %vm541, %v543, %v539
  %v545 = vmul.f32 1.0, %v544
  %v546 = vtanh.pop %v488
  %v547 = vmul.f32 %v530, %v395
  %v548 = vmul.f32 %v515, %v546
  %v549 = vadd.f32 %v547, %v548
  %v550 = vtanh.pop %v549
  %v551 = vmul.f32 %v545, %v550
  %s552 = scalar_lea.vmem %s4, 16
  %553 = vst [vmem:[%s552] sm:$0xff] %v551
  %s554 = scalar_lea.vmem %s0, 96
  %v555 = vld [vmem:[%s554] sm:$0xff]
  %v556 = vld [vmem:[%s554 + $0x8] sm:$0xff]
  %v557 = vld [vmem:[%s554 + $0x10] sm:$0xff]
  %v558 = vld [vmem:[%s554 + $0x18] sm:$0xff]
  %559 = vmatpush.msra.mxu0 %v88
  %560 = vmatpush.msra.mxu0 %v84
  %561 = vmatpush.msra.mxu0 %v80
  %562 = vmatpush.msra.mxu0 %v76
  %563 = vmatpush.msra.mxu0 %v72
  %564 = vmatpush.msra.mxu0 %v68
  %565 = vmatpush.msra.mxu0 %v64
  %566 = vmatpush.msra.mxu0 %v60
  %567 = vmatpush.msra.mxu0 %v56
  %568 = vmatpush.msra.mxu0 %v52
  %569 = vmatpush.msra.mxu0 %v48
  %570 = vmatpush.msra.mxu0 %v44
  %571 = vmatpush.msra.mxu0 %v40
  %572 = vmatpush.msra.mxu0 %v36
  %573 = vmatpush.msra.mxu0 %v32
  %574 = vmatpush.msra.mxu0 %v28
  %575 = vmatmul.f32.gmra.mxu0 %v551
  %v576 = vpop.f32.mrf.mxu0
  %v577 = vadd.f32 0.0, %v576
  %578 = vdwg.mxu0
  %579 = vmatpush.msra.mxu0 %v89
  %580 = vmatpush.msra.mxu0 %v85
  %581 = vmatpush.msra.mxu0 %v81
  %582 = vmatpush.msra.mxu0 %v77
  %583 = vmatpush.msra.mxu0 %v73
  %584 = vmatpush.msra.mxu0 %v69
  %585 = vmatpush.msra.mxu0 %v65
  %586 = vmatpush.msra.mxu0 %v61
  %587 = vmatpush.msra.mxu0 %v57
  %588 = vmatpush.msra.mxu0 %v53
  %589 = vmatpush.msra.mxu0 %v49
  %590 = vmatpush.msra.mxu0 %v45
  %591 = vmatpush.msra.mxu0 %v41
  %592 = vmatpush.msra.mxu0 %v37
  %593 = vmatpush.msra.mxu0 %v33
  %594 = vmatpush.msra.mxu0 %v29
  %595 = vmatmul.f32.gmra.mxu0 %v551
  %v596 = vpop.f32.mrf.mxu0
  %v597 = vadd.f32 0.0, %v596
  %598 = vdwg.mxu0
  %599 = vmatpush.msra.mxu0 %v90
  %600 = vmatpush.msra.mxu0 %v86
  %601 = vmatpush.msra.mxu0 %v82
  %602 = vmatpush.msra.mxu0 %v78
  %603 = vmatpush.msra.mxu0 %v74
  %604 = vmatpush.msra.mxu0 %v70
  %605 = vmatpush.msra.mxu0 %v66
  %606 = vmatpush.msra.mxu0 %v62
  %607 = vmatpush.msra.mxu0 %v58
  %608 = vmatpush.msra.mxu0 %v54
  %609 = vmatpush.msra.mxu0 %v50
  %610 = vmatpush.msra.mxu0 %v46
  %611 = vmatpush.msra.mxu0 %v42
  %612 = vmatpush.msra.mxu0 %v38
  %613 = vmatpush.msra.mxu0 %v34
  %614 = vmatpush.msra.mxu0 %v30
  %615 = vmatmul.f32.gmra.mxu0 %v551
  %v616 = vpop.f32.mrf.mxu0
  %v617 = vadd.f32 0.0, %v616
  %618 = vdwg.mxu0
  %619 = vmatpush.msra.mxu0 %v91
  %620 = vmatpush.msra.mxu0 %v87
  %621 = vmatpush.msra.mxu0 %v83
  %622 = vmatpush.msra.mxu0 %v79
  %623 = vmatpush.msra.mxu0 %v75
  %624 = vmatpush.msra.mxu0 %v71
  %625 = vmatpush.msra.mxu0 %v67
  %626 = vmatpush.msra.mxu0 %v63
  %627 = vmatpush.msra.mxu0 %v59
  %628 = vmatpush.msra.mxu0 %v55
  %629 = vmatpush.msra.mxu0 %v51
  %630 = vmatpush.msra.mxu0 %v47
  %631 = vmatpush.msra.mxu0 %v43
  %632 = vmatpush.msra.mxu0 %v39
  %633 = vmatpush.msra.mxu0 %v35
  %634 = vmatpush.msra.mxu0 %v31
  %635 = vmatmul.f32.gmra.mxu0 %v551
  %v636 = vpop.f32.mrf.mxu0
  %v637 = vadd.f32 0.0, %v636
  %638 = vdwg.mxu0
  %v639 = vadd.f32 %v555, %v577
  %v640 = vadd.f32 %v556, %v597
  %v641 = vadd.f32 %v557, %v617
  %v642 = vadd.f32 %v558, %v637
  %v643 = vxor.u32 %v639, 2147483648
  %v644 = vxor.u32 %v640, 2147483648
  %v645 = vxor.u32 %v641, 2147483648
  %v646 = vmul.f32 %v643, 1.442695
  %v647 = vpow.pop %v646
  %v648 = vmul.f32 %v644, 1.442695
  %v649 = vpow.pop %v648
  %v650 = vmul.f32 %v645, 1.442695
  %v651 = vpow.pop %v650
  %v652 = vadd.f32 %v647, 1.0
  %v653 = vadd.f32 %v649, 1.0
  %v654 = vadd.f32 %v651, 1.0
  %v655 = vrcp.pop %v652
  %v656 = vmul.f32 %v652, %v655
  %v657 = vsub.f32 1.0, %v656
  %v658 = vmul.f32 %v655, %v657
  %v659 = vadd.f32 %v655, %v658
  %vm660 = vweird.f32 %v652
  %vm661 = vweird.f32 %v655
  %vm662 = vmor %vm660, %vm661
  %v663 = vsel %vm662, %v655, %v659
  %v664 = vand.u32 2147483647, %v652
  %vm665 = vcmp.eq.f32.partialorder %v664, 8.507059e+37
  %v666 = vand.u32 %v652, 2147483648
  %v667 = vor.u32 1.1754944e-38, %v666
  %v668 = vsel %vm665, %v667, %v663
  %v669 = vmul.f32 1.0, %v668
  %v670 = vrcp.pop %v653
  %v671 = vmul.f32 %v653, %v670
  %v672 = vsub.f32 1.0, %v671
  %v673 = vmul.f32 %v670, %v672
  %v674 = vadd.f32 %v670, %v673
  %vm675 = vweird.f32 %v653
  %vm676 = vweird.f32 %v670
  %vm677 = vmor %vm675, %vm676
  %v678 = vsel %vm677, %v670, %v674
  %v679 = vand.u32 2147483647, %v653
  %vm680 = vcmp.eq.f32.partialorder %v679, 8.507059e+37
  %v681 = vand.u32 %v653, 2147483648
  %v682 = vor.u32 1.1754944e-38, %v681
  %v683 = vsel %vm680, %v682, %v678
  %v684 = vmul.f32 1.0, %v683
  %v685 = vrcp.pop %v654
  %v686 = vmul.f32 %v654, %v685
  %v687 = vsub.f32 1.0, %v686
  %v688 = vmul.f32 %v685, %v687
  %v689 = vadd.f32 %v685, %v688
  %vm690 = vweird.f32 %v654
  %vm691 = vweird.f32 %v685
  %vm692 = vmor %vm690, %vm691
  %v693 = vsel %vm692, %v685, %v689
  %v694 = vand.u32 2147483647, %v654
  %vm695 = vcmp.eq.f32.partialorder %v694, 8.507059e+37
  %v696 = vand.u32 %v654, 2147483648
  %v697 = vor.u32 1.1754944e-38, %v696
  %v698 = vsel %vm695, %v697, %v693
  %v699 = vmul.f32 1.0, %v698
  %v700 = vtanh.pop %v642
  %v701 = vmul.f32 %v684, %v549
  %v702 = vmul.f32 %v669, %v700
  %v703 = vadd.f32 %v701, %v702
  %v704 = vtanh.pop %v703
  %v705 = vmul.f32 %v699, %v704
  %s706 = scalar_lea.vmem %s4, 24
  %707 = vst [vmem:[%s706] sm:$0xff] %v705
  %s708 = scalar_lea.vmem %s0, 128
  %v709 = vld [vmem:[%s708] sm:$0xff]
  %v710 = vld [vmem:[%s708 + $0x8] sm:$0xff]
  %v711 = vld [vmem:[%s708 + $0x10] sm:$0xff]
  %v712 = vld [vmem:[%s708 + $0x18] sm:$0xff]
  %713 = vmatpush.msra.mxu0 %v88
  %714 = vmatpush.msra.mxu0 %v84
  %715 = vmatpush.msra.mxu0 %v80
  %716 = vmatpush.msra.mxu0 %v76
  %717 = vmatpush.msra.mxu0 %v72
  %718 = vmatpush.msra.mxu0 %v68
  %719 = vmatpush.msra.mxu0 %v64
  %720 = vmatpush.msra.mxu0 %v60
  %721 = vmatpush.msra.mxu0 %v56
  %722 = vmatpush.msra.mxu0 %v52
  %723 = vmatpush.msra.mxu0 %v48
  %724 = vmatpush.msra.mxu0 %v44
  %725 = vmatpush.msra.mxu0 %v40
  %726 = vmatpush.msra.mxu0 %v36
  %727 = vmatpush.msra.mxu0 %v32
  %728 = vmatpush.msra.mxu0 %v28
  %729 = vmatmul.f32.gmra.mxu0 %v705
  %v730 = vpop.f32.mrf.mxu0
  %v731 = vadd.f32 0.0, %v730
  %732 = vdwg.mxu0
  %733 = vmatpush.msra.mxu0 %v89
  %734 = vmatpush.msra.mxu0 %v85
  %735 = vmatpush.msra.mxu0 %v81
  %736 = vmatpush.msra.mxu0 %v77
  %737 = vmatpush.msra.mxu0 %v73
  %738 = vmatpush.msra.mxu0 %v69
  %739 = vmatpush.msra.mxu0 %v65
  %740 = vmatpush.msra.mxu0 %v61
  %741 = vmatpush.msra.mxu0 %v57
  %742 = vmatpush.msra.mxu0 %v53
  %743 = vmatpush.msra.mxu0 %v49
  %744 = vmatpush.msra.mxu0 %v45
  %745 = vmatpush.msra.mxu0 %v41
  %746 = vmatpush.msra.mxu0 %v37
  %747 = vmatpush.msra.mxu0 %v33
  %748 = vmatpush.msra.mxu0 %v29
  %749 = vmatmul.f32.gmra.mxu0 %v705
  %v750 = vpop.f32.mrf.mxu0
  %v751 = vadd.f32 0.0, %v750
  %752 = vdwg.mxu0
  %753 = vmatpush.msra.mxu0 %v90
  %754 = vmatpush.msra.mxu0 %v86
  %755 = vmatpush.msra.mxu0 %v82
  %756 = vmatpush.msra.mxu0 %v78
  %757 = vmatpush.msra.mxu0 %v74
  %758 = vmatpush.msra.mxu0 %v70
  %759 = vmatpush.msra.mxu0 %v66
  %760 = vmatpush.msra.mxu0 %v62
  %761 = vmatpush.msra.mxu0 %v58
  %762 = vmatpush.msra.mxu0 %v54
  %763 = vmatpush.msra.mxu0 %v50
  %764 = vmatpush.msra.mxu0 %v46
  %765 = vmatpush.msra.mxu0 %v42
  %766 = vmatpush.msra.mxu0 %v38
  %767 = vmatpush.msra.mxu0 %v34
  %768 = vmatpush.msra.mxu0 %v30
  %769 = vmatmul.f32.gmra.mxu0 %v705
  %v770 = vpop.f32.mrf.mxu0
  %v771 = vadd.f32 0.0, %v770
  %772 = vdwg.mxu0
  %773 = vmatpush.msra.mxu0 %v91
  %774 = vmatpush.msra.mxu0 %v87
  %775 = vmatpush.msra.mxu0 %v83
  %776 = vmatpush.msra.mxu0 %v79
  %777 = vmatpush.msra.mxu0 %v75
  %778 = vmatpush.msra.mxu0 %v71
  %779 = vmatpush.msra.mxu0 %v67
  %780 = vmatpush.msra.mxu0 %v63
  %781 = vmatpush.msra.mxu0 %v59
  %782 = vmatpush.msra.mxu0 %v55
  %783 = vmatpush.msra.mxu0 %v51
  %784 = vmatpush.msra.mxu0 %v47
  %785 = vmatpush.msra.mxu0 %v43
  %786 = vmatpush.msra.mxu0 %v39
  %787 = vmatpush.msra.mxu0 %v35
  %788 = vmatpush.msra.mxu0 %v31
  %789 = vmatmul.f32.gmra.mxu0 %v705
  %v790 = vpop.f32.mrf.mxu0
  %v791 = vadd.f32 0.0, %v790
  %792 = vdwg.mxu0
  %v793 = vadd.f32 %v709, %v731
  %v794 = vadd.f32 %v710, %v751
  %v795 = vadd.f32 %v711, %v771
  %v796 = vadd.f32 %v712, %v791
  %v797 = vxor.u32 %v793, 2147483648
  %v798 = vxor.u32 %v794, 2147483648
  %v799 = vxor.u32 %v795, 2147483648
  %v800 = vmul.f32 %v797, 1.442695
  %v801 = vpow.pop %v800
  %v802 = vmul.f32 %v798, 1.442695
  %v803 = vpow.pop %v802
  %v804 = vmul.f32 %v799, 1.442695
  %v805 = vpow.pop %v804
  %v806 = vadd.f32 %v801, 1.0
  %v807 = vadd.f32 %v803, 1.0
  %v808 = vadd.f32 %v805, 1.0
  %v809 = vrcp.pop %v806
  %v810 = vmul.f32 %v806, %v809
  %v811 = vsub.f32 1.0, %v810
  %v812 = vmul.f32 %v809, %v811
  %v813 = vadd.f32 %v809, %v812
  %vm814 = vweird.f32 %v806
  %vm815 = vweird.f32 %v809
  %vm816 = vmor %vm814, %vm815
  %v817 = vsel %vm816, %v809, %v813
  %v818 = vand.u32 2147483647, %v806
  %vm819 = vcmp.eq.f32.partialorder %v818, 8.507059e+37
  %v820 = vand.u32 %v806, 2147483648
  %v821 = vor.u32 1.1754944e-38, %v820
  %v822 = vsel %vm819, %v821, %v817
  %v823 = vmul.f32 1.0, %v822
  %v824 = vrcp.pop %v807
  %v825 = vmul.f32 %v807, %v824
  %v826 = vsub.f32 1.0, %v825
  %v827 = vmul.f32 %v824, %v826
  %v828 = vadd.f32 %v824, %v827
  %vm829 = vweird.f32 %v807
  %vm830 = vweird.f32 %v824
  %vm831 = vmor %vm829, %vm830
  %v832 = vsel %vm831, %v824, %v828
  %v833 = vand.u32 2147483647, %v807
  %vm834 = vcmp.eq.f32.partialorder %v833, 8.507059e+37
  %v835 = vand.u32 %v807, 2147483648
  %v836 = vor.u32 1.1754944e-38, %v835
  %v837 = vsel %vm834, %v836, %v832
  %v838 = vmul.f32 1.0, %v837
  %v839 = vrcp.pop %v808
  %v840 = vmul.f32 %v808, %v839
  %v841 = vsub.f32 1.0, %v840
  %v842 = vmul.f32 %v839, %v841
  %v843 = vadd.f32 %v839, %v842
  %vm844 = vweird.f32 %v808
  %vm845 = vweird.f32 %v839
  %vm846 = vmor %vm844, %vm845
  %v847 = vsel %vm846, %v839, %v843
  %v848 = vand.u32 2147483647, %v808
  %vm849 = vcmp.eq.f32.partialorder %v848, 8.507059e+37
  %v850 = vand.u32 %v808, 2147483648
  %v851 = vor.u32 1.1754944e-38, %v850
  %v852 = vsel %vm849, %v851, %v847
  %v853 = vmul.f32 1.0, %v852
  %v854 = vtanh.pop %v796
  %v855 = vmul.f32 %v838, %v703
  %v856 = vmul.f32 %v823, %v854
  %v857 = vadd.f32 %v855, %v856
  %v858 = vtanh.pop %v857
  %v859 = vmul.f32 %v853, %v858
  %s860 = scalar_lea.vmem %s4, 32
  %861 = vst [vmem:[%s860] sm:$0xff] %v859
  %s862 = scalar_lea.vmem %s0, 160
  %v863 = vld [vmem:[%s862] sm:$0xff]
  %v864 = vld [vmem:[%s862 + $0x8] sm:$0xff]
  %v865 = vld [vmem:[%s862 + $0x10] sm:$0xff]
  %v866 = vld [vmem:[%s862 + $0x18] sm:$0xff]
  %867 = vmatpush.msra.mxu0 %v88
  %868 = vmatpush.msra.mxu0 %v84
  %869 = vmatpush.msra.mxu0 %v80
  %870 = vmatpush.msra.mxu0 %v76
  %871 = vmatpush.msra.mxu0 %v72
  %872 = vmatpush.msra.mxu0 %v68
  %873 = vmatpush.msra.mxu0 %v64
  %874 = vmatpush.msra.mxu0 %v60
  %875 = vmatpush.msra.mxu0 %v56
  %876 = vmatpush.msra.mxu0 %v52
  %877 = vmatpush.msra.mxu0 %v48
  %878 = vmatpush.msra.mxu0 %v44
  %879 = vmatpush.msra.mxu0 %v40
  %880 = vmatpush.msra.mxu0 %v36
  %881 = vmatpush.msra.mxu0 %v32
  %882 = vmatpush.msra.mxu0 %v28
  %883 = vmatmul.f32.gmra.mxu0 %v859
  %v884 = vpop.f32.mrf.mxu0
  %v885 = vadd.f32 0.0, %v884
  %886 = vdwg.mxu0
  %887 = vmatpush.msra.mxu0 %v89
  %888 = vmatpush.msra.mxu0 %v85
  %889 = vmatpush.msra.mxu0 %v81
  %890 = vmatpush.msra.mxu0 %v77
  %891 = vmatpush.msra.mxu0 %v73
  %892 = vmatpush.msra.mxu0 %v69
  %893 = vmatpush.msra.mxu0 %v65
  %894 = vmatpush.msra.mxu0 %v61
  %895 = vmatpush.msra.mxu0 %v57
  %896 = vmatpush.msra.mxu0 %v53
  %897 = vmatpush.msra.mxu0 %v49
  %898 = vmatpush.msra.mxu0 %v45
  %899 = vmatpush.msra.mxu0 %v41
  %900 = vmatpush.msra.mxu0 %v37
  %901 = vmatpush.msra.mxu0 %v33
  %902 = vmatpush.msra.mxu0 %v29
  %903 = vmatmul.f32.gmra.mxu0 %v859
  %v904 = vpop.f32.mrf.mxu0
  %v905 = vadd.f32 0.0, %v904
  %906 = vdwg.mxu0
  %907 = vmatpush.msra.mxu0 %v90
  %908 = vmatpush.msra.mxu0 %v86
  %909 = vmatpush.msra.mxu0 %v82
  %910 = vmatpush.msra.mxu0 %v78
  %911 = vmatpush.msra.mxu0 %v74
  %912 = vmatpush.msra.mxu0 %v70
  %913 = vmatpush.msra.mxu0 %v66
  %914 = vmatpush.msra.mxu0 %v62
  %915 = vmatpush.msra.mxu0 %v58
  %916 = vmatpush.msra.mxu0 %v54
  %917 = vmatpush.msra.mxu0 %v50
  %918 = vmatpush.msra.mxu0 %v46
  %919 = vmatpush.msra.mxu0 %v42
  %920 = vmatpush.msra.mxu0 %v38
  %921 = vmatpush.msra.mxu0 %v34
  %922 = vmatpush.msra.mxu0 %v30
  %923 = vmatmul.f32.gmra.mxu0 %v859
  %v924 = vpop.f32.mrf.mxu0
  %v925 = vadd.f32 0.0, %v924
  %926 = vdwg.mxu0
  %927 = vmatpush.msra.mxu0 %v91
  %928 = vmatpush.msra.mxu0 %v87
  %929 = vmatpush.msra.mxu0 %v83
  %930 = vmatpush.msra.mxu0 %v79
  %931 = vmatpush.msra.mxu0 %v75
  %932 = vmatpush.msra.mxu0 %v71
  %933 = vmatpush.msra.mxu0 %v67
  %934 = vmatpush.msra.mxu0 %v63
  %935 = vmatpush.msra.mxu0 %v59
  %936 = vmatpush.msra.mxu0 %v55
  %937 = vmatpush.msra.mxu0 %v51
  %938 = vmatpush.msra.mxu0 %v47
  %939 = vmatpush.msra.mxu0 %v43
  %940 = vmatpush.msra.mxu0 %v39
  %941 = vmatpush.msra.mxu0 %v35
  %942 = vmatpush.msra.mxu0 %v31
  %943 = vmatmul.f32.gmra.mxu0 %v859
  %v944 = vpop.f32.mrf.mxu0
  %v945 = vadd.f32 0.0, %v944
  %946 = vdwg.mxu0
  %v947 = vadd.f32 %v863, %v885
  %v948 = vadd.f32 %v864, %v905
  %v949 = vadd.f32 %v865, %v925
  %v950 = vadd.f32 %v866, %v945
  %v951 = vxor.u32 %v947, 2147483648
  %v952 = vxor.u32 %v948, 2147483648
  %v953 = vxor.u32 %v949, 2147483648
  %v954 = vmul.f32 %v951, 1.442695
  %v955 = vpow.pop %v954
  %v956 = vmul.f32 %v952, 1.442695
  %v957 = vpow.pop %v956
  %v958 = vmul.f32 %v953, 1.442695
  %v959 = vpow.pop %v958
  %v960 = vadd.f32 %v955, 1.0
  %v961 = vadd.f32 %v957, 1.0
  %v962 = vadd.f32 %v959, 1.0
  %v963 = vrcp.pop %v960
  %v964 = vmul.f32 %v960, %v963
  %v965 = vsub.f32 1.0, %v964
  %v966 = vmul.f32 %v963, %v965
  %v967 = vadd.f32 %v963, %v966
  %vm968 = vweird.f32 %v960
  %vm969 = vweird.f32 %v963
  %vm970 = vmor %vm968, %vm969
  %v971 = vsel %vm970, %v963, %v967
  %v972 = vand.u32 2147483647, %v960
  %vm973 = vcmp.eq.f32.partialorder %v972, 8.507059e+37
  %v974 = vand.u32 %v960, 2147483648
  %v975 = vor.u32 1.1754944e-38, %v974
  %v976 = vsel %vm973, %v975, %v971
  %v977 = vmul.f32 1.0, %v976
  %v978 = vrcp.pop %v961
  %v979 = vmul.f32 %v961, %v978
  %v980 = vsub.f32 1.0, %v979
  %v981 = vmul.f32 %v978, %v980
  %v982 = vadd.f32 %v978, %v981
  %vm983 = vweird.f32 %v961
  %vm984 = vweird.f32 %v978
  %vm985 = vmor %vm983, %vm984
  %v986 = vsel %vm985, %v978, %v982
  %v987 = vand.u32 2147483647, %v961
  %vm988 = vcmp.eq.f32.partialorder %v987, 8.507059e+37
  %v989 = vand.u32 %v961, 2147483648
  %v990 = vor.u32 1.1754944e-38, %v989
  %v991 = vsel %vm988, %v990, %v986
  %v992 = vmul.f32 1.0, %v991
  %v993 = vrcp.pop %v962
  %v994 = vmul.f32 %v962, %v993
  %v995 = vsub.f32 1.0, %v994
  %v996 = vmul.f32 %v993, %v995
  %v997 = vadd.f32 %v993, %v996
  %vm998 = vweird.f32 %v962
  %vm999 = vweird.f32 %v993
  %vm1000 = vmor %vm998, %vm999
  %v1001 = vsel %vm1000, %v993, %v997
  %v1002 = vand.u32 2147483647, %v962
  %vm1003 = vcmp.eq.f32.partialorder %v1002, 8.507059e+37
  %v1004 = vand.u32 %v962, 2147483648
  %v1005 = vor.u32 1.1754944e-38, %v1004
  %v1006 = vsel %vm1003, %v1005, %v1001
  %v1007 = vmul.f32 1.0, %v1006
  %v1008 = vtanh.pop %v950
  %v1009 = vmul.f32 %v992, %v857
  %v1010 = vmul.f32 %v977, %v1008
  %v1011 = vadd.f32 %v1009, %v1010
  %v1012 = vtanh.pop %v1011
  %v1013 = vmul.f32 %v1007, %v1012
  %s1014 = scalar_lea.vmem %s4, 40
  %1015 = vst [vmem:[%s1014] sm:$0xff] %v1013
  %s1016 = scalar_lea.vmem %s0, 192
  %v1017 = vld [vmem:[%s1016] sm:$0xff]
  %v1018 = vld [vmem:[%s1016 + $0x8] sm:$0xff]
  %v1019 = vld [vmem:[%s1016 + $0x10] sm:$0xff]
  %v1020 = vld [vmem:[%s1016 + $0x18] sm:$0xff]
  %1021 = vmatpush.msra.mxu0 %v88
  %1022 = vmatpush.msra.mxu0 %v84
  %1023 = vmatpush.msra.mxu0 %v80
  %1024 = vmatpush.msra.mxu0 %v76
  %1025 = vmatpush.msra.mxu0 %v72
  %1026 = vmatpush.msra.mxu0 %v68
  %1027 = vmatpush.msra.mxu0 %v64
  %1028 = vmatpush.msra.mxu0 %v60
  %1029 = vmatpush.msra.mxu0 %v56
  %1030 = vmatpush.msra.mxu0 %v52
  %1031 = vmatpush.msra.mxu0 %v48
  %1032 = vmatpush.msra.mxu0 %v44
  %1033 = vmatpush.msra.mxu0 %v40
  %1034 = vmatpush.msra.mxu0 %v36
  %1035 = vmatpush.msra.mxu0 %v32
  %1036 = vmatpush.msra.mxu0 %v28
  %1037 = vmatmul.f32.gmra.mxu0 %v1013
  %v1038 = vpop.f32.mrf.mxu0
  %v1039 = vadd.f32 0.0, %v1038
  %1040 = vdwg.mxu0
  %1041 = vmatpush.msra.mxu0 %v89
  %1042 = vmatpush.msra.mxu0 %v85
  %1043 = vmatpush.msra.mxu0 %v81
  %1044 = vmatpush.msra.mxu0 %v77
  %1045 = vmatpush.msra.mxu0 %v73
  %1046 = vmatpush.msra.mxu0 %v69
  %1047 = vmatpush.msra.mxu0 %v65
  %1048 = vmatpush.msra.mxu0 %v61
  %1049 = vmatpush.msra.mxu0 %v57
  %1050 = vmatpush.msra.mxu0 %v53
  %1051 = vmatpush.msra.mxu0 %v49
  %1052 = vmatpush.msra.mxu0 %v45
  %1053 = vmatpush.msra.mxu0 %v41
  %1054 = vmatpush.msra.mxu0 %v37
  %1055 = vmatpush.msra.mxu0 %v33
  %1056 = vmatpush.msra.mxu0 %v29
  %1057 = vmatmul.f32.gmra.mxu0 %v1013
  %v1058 = vpop.f32.mrf.mxu0
  %v1059 = vadd.f32 0.0, %v1058
  %1060 = vdwg.mxu0
  %1061 = vmatpush.msra.mxu0 %v90
  %1062 = vmatpush.msra.mxu0 %v86
  %1063 = vmatpush.msra.mxu0 %v82
  %1064 = vmatpush.msra.mxu0 %v78
  %1065 = vmatpush.msra.mxu0 %v74
  %1066 = vmatpush.msra.mxu0 %v70
  %1067 = vmatpush.msra.mxu0 %v66
  %1068 = vmatpush.msra.mxu0 %v62
  %1069 = vmatpush.msra.mxu0 %v58
  %1070 = vmatpush.msra.mxu0 %v54
  %1071 = vmatpush.msra.mxu0 %v50
  %1072 = vmatpush.msra.mxu0 %v46
  %1073 = vmatpush.msra.mxu0 %v42
  %1074 = vmatpush.msra.mxu0 %v38
  %1075 = vmatpush.msra.mxu0 %v34
  %1076 = vmatpush.msra.mxu0 %v30
  %1077 = vmatmul.f32.gmra.mxu0 %v1013
  %v1078 = vpop.f32.mrf.mxu0
  %v1079 = vadd.f32 0.0, %v1078
  %1080 = vdwg.mxu0
  %1081 = vmatpush.msra.mxu0 %v91
  %1082 = vmatpush.msra.mxu0 %v87
  %1083 = vmatpush.msra.mxu0 %v83
  %1084 = vmatpush.msra.mxu0 %v79
  %1085 = vmatpush.msra.mxu0 %v75
  %1086 = vmatpush.msra.mxu0 %v71
  %1087 = vmatpush.msra.mxu0 %v67
  %1088 = vmatpush.msra.mxu0 %v63
  %1089 = vmatpush.msra.mxu0 %v59
  %1090 = vmatpush.msra.mxu0 %v55
  %1091 = vmatpush.msra.mxu0 %v51
  %1092 = vmatpush.msra.mxu0 %v47
  %1093 = vmatpush.msra.mxu0 %v43
  %1094 = vmatpush.msra.mxu0 %v39
  %1095 = vmatpush.msra.mxu0 %v35
  %1096 = vmatpush.msra.mxu0 %v31
  %1097 = vmatmul.f32.gmra.mxu0 %v1013
  %v1098 = vpop.f32.mrf.mxu0
  %v1099 = vadd.f32 0.0, %v1098
  %1100 = vdwg.mxu0
  %v1101 = vadd.f32 %v1017, %v1039
  %v1102 = vadd.f32 %v1018, %v1059
  %v1103 = vadd.f32 %v1019, %v1079
  %v1104 = vadd.f32 %v1020, %v1099
  %v1105 = vxor.u32 %v1101, 2147483648
  %v1106 = vxor.u32 %v1102, 2147483648
  %v1107 = vxor.u32 %v1103, 2147483648
  %v1108 = vmul.f32 %v1105, 1.442695
  %v1109 = vpow.pop %v1108
  %v1110 = vmul.f32 %v1106, 1.442695
  %v1111 = vpow.pop %v1110
  %v1112 = vmul.f32 %v1107, 1.442695
  %v1113 = vpow.pop %v1112
  %v1114 = vadd.f32 %v1109, 1.0
  %v1115 = vadd.f32 %v1111, 1.0
  %v1116 = vadd.f32 %v1113, 1.0
  %v1117 = vrcp.pop %v1114
  %v1118 = vmul.f32 %v1114, %v1117
  %v1119 = vsub.f32 1.0, %v1118
  %v1120 = vmul.f32 %v1117, %v1119
  %v1121 = vadd.f32 %v1117, %v1120
  %vm1122 = vweird.f32 %v1114
  %vm1123 = vweird.f32 %v1117
  %vm1124 = vmor %vm1122, %vm1123
  %v1125 = vsel %vm1124, %v1117, %v1121
  %v1126 = vand.u32 2147483647, %v1114
  %vm1127 = vcmp.eq.f32.partialorder %v1126, 8.507059e+37
  %v1128 = vand.u32 %v1114, 2147483648
  %v1129 = vor.u32 1.1754944e-38, %v1128
  %v1130 = vsel %vm1127, %v1129, %v1125
  %v1131 = vmul.f32 1.0, %v1130
  %v1132 = vrcp.pop %v1115
  %v1133 = vmul.f32 %v1115, %v1132
  %v1134 = vsub.f32 1.0, %v1133
  %v1135 = vmul.f32 %v1132, %v1134
  %v1136 = vadd.f32 %v1132, %v1135
  %vm1137 = vweird.f32 %v1115
  %vm1138 = vweird.f32 %v1132
  %vm1139 = vmor %vm1137, %vm1138
  %v1140 = vsel %vm1139, %v1132, %v1136
  %v1141 = vand.u32 2147483647, %v1115
  %vm1142 = vcmp.eq.f32.partialorder %v1141, 8.507059e+37
  %v1143 = vand.u32 %v1115, 2147483648
  %v1144 = vor.u32 1.1754944e-38, %v1143
  %v1145 = vsel %vm1142, %v1144, %v1140
  %v1146 = vmul.f32 1.0, %v1145
  %v1147 = vrcp.pop %v1116
  %v1148 = vmul.f32 %v1116, %v1147
  %v1149 = vsub.f32 1.0, %v1148
  %v1150 = vmul.f32 %v1147, %v1149
  %v1151 = vadd.f32 %v1147, %v1150
  %vm1152 = vweird.f32 %v1116
  %vm1153 = vweird.f32 %v1147
  %vm1154 = vmor %vm1152, %vm1153
  %v1155 = vsel %vm1154, %v1147, %v1151
  %v1156 = vand.u32 2147483647, %v1116
  %vm1157 = vcmp.eq.f32.partialorder %v1156, 8.507059e+37
  %v1158 = vand.u32 %v1116, 2147483648
  %v1159 = vor.u32 1.1754944e-38, %v1158
  %v1160 = vsel %vm1157, %v1159, %v1155
  %v1161 = vmul.f32 1.0, %v1160
  %v1162 = vtanh.pop %v1104
  %v1163 = vmul.f32 %v1146, %v1011
  %v1164 = vmul.f32 %v1131, %v1162
  %v1165 = vadd.f32 %v1163, %v1164
  %v1166 = vtanh.pop %v1165
  %v1167 = vmul.f32 %v1161, %v1166
  %s1168 = scalar_lea.vmem %s4, 48
  %1169 = vst [vmem:[%s1168] sm:$0xff] %v1167
  %s1170 = scalar_lea.vmem %s0, 224
  %v1171 = vld [vmem:[%s1170] sm:$0xff]
  %v1172 = vld [vmem:[%s1170 + $0x8] sm:$0xff]
  %v1173 = vld [vmem:[%s1170 + $0x10] sm:$0xff]
  %v1174 = vld [vmem:[%s1170 + $0x18] sm:$0xff]
  %1175 = vmatpush.msra.mxu0 %v88
  %1176 = vmatpush.msra.mxu0 %v84
  %1177 = vmatpush.msra.mxu0 %v80
  %1178 = vmatpush.msra.mxu0 %v76
  %1179 = vmatpush.msra.mxu0 %v72
  %1180 = vmatpush.msra.mxu0 %v68
  %1181 = vmatpush.msra.mxu0 %v64
  %1182 = vmatpush.msra.mxu0 %v60
  %1183 = vmatpush.msra.mxu0 %v56
  %1184 = vmatpush.msra.mxu0 %v52
  %1185 = vmatpush.msra.mxu0 %v48
  %1186 = vmatpush.msra.mxu0 %v44
  %1187 = vmatpush.msra.mxu0 %v40
  %1188 = vmatpush.msra.mxu0 %v36
  %1189 = vmatpush.msra.mxu0 %v32
  %1190 = vmatpush.msra.mxu0 %v28
  %1191 = vmatmul.f32.gmra.mxu0 %v1167
  %v1192 = vpop.f32.mrf.mxu0
  %v1193 = vadd.f32 0.0, %v1192
  %1194 = vdwg.mxu0
  %1195 = vmatpush.msra.mxu0 %v89
  %1196 = vmatpush.msra.mxu0 %v85
  %1197 = vmatpush.msra.mxu0 %v81
  %1198 = vmatpush.msra.mxu0 %v77
  %1199 = vmatpush.msra.mxu0 %v73
  %1200 = vmatpush.msra.mxu0 %v69
  %1201 = vmatpush.msra.mxu0 %v65
  %1202 = vmatpush.msra.mxu0 %v61
  %1203 = vmatpush.msra.mxu0 %v57
  %1204 = vmatpush.msra.mxu0 %v53
  %1205 = vmatpush.msra.mxu0 %v49
  %1206 = vmatpush.msra.mxu0 %v45
  %1207 = vmatpush.msra.mxu0 %v41
  %1208 = vmatpush.msra.mxu0 %v37
  %1209 = vmatpush.msra.mxu0 %v33
  %1210 = vmatpush.msra.mxu0 %v29
  %1211 = vmatmul.f32.gmra.mxu0 %v1167
  %v1212 = vpop.f32.mrf.mxu0
  %v1213 = vadd.f32 0.0, %v1212
  %1214 = vdwg.mxu0
  %1215 = vmatpush.msra.mxu0 %v90
  %1216 = vmatpush.msra.mxu0 %v86
  %1217 = vmatpush.msra.mxu0 %v82
  %1218 = vmatpush.msra.mxu0 %v78
  %1219 = vmatpush.msra.mxu0 %v74
  %1220 = vmatpush.msra.mxu0 %v70
  %1221 = vmatpush.msra.mxu0 %v66
  %1222 = vmatpush.msra.mxu0 %v62
  %1223 = vmatpush.msra.mxu0 %v58
  %1224 = vmatpush.msra.mxu0 %v54
  %1225 = vmatpush.msra.mxu0 %v50
  %1226 = vmatpush.msra.mxu0 %v46
  %1227 = vmatpush.msra.mxu0 %v42
  %1228 = vmatpush.msra.mxu0 %v38
  %1229 = vmatpush.msra.mxu0 %v34
  %1230 = vmatpush.msra.mxu0 %v30
  %1231 = vmatmul.f32.gmra.mxu0 %v1167
  %v1232 = vpop.f32.mrf.mxu0
  %v1233 = vadd.f32 0.0, %v1232
  %1234 = vdwg.mxu0
  %1235 = vmatpush.msra.mxu0 %v91
  %1236 = vmatpush.msra.mxu0 %v87
  %1237 = vmatpush.msra.mxu0 %v83
  %1238 = vmatpush.msra.mxu0 %v79
  %1239 = vmatpush.msra.mxu0 %v75
  %1240 = vmatpush.msra.mxu0 %v71
  %1241 = vmatpush.msra.mxu0 %v67
  %1242 = vmatpush.msra.mxu0 %v63
  %1243 = vmatpush.msra.mxu0 %v59
  %1244 = vmatpush.msra.mxu0 %v55
  %1245 = vmatpush.msra.mxu0 %v51
  %1246 = vmatpush.msra.mxu0 %v47
  %1247 = vmatpush.msra.mxu0 %v43
  %1248 = vmatpush.msra.mxu0 %v39
  %1249 = vmatpush.msra.mxu0 %v35
  %1250 = vmatpush.msra.mxu0 %v31
  %1251 = vmatmul.f32.gmra.mxu0 %v1167
  %v1252 = vpop.f32.mrf.mxu0
  %v1253 = vadd.f32 0.0, %v1252
  %1254 = vdwg.mxu0
  %v1255 = vadd.f32 %v1171, %v1193
  %v1256 = vadd.f32 %v1172, %v1213
  %v1257 = vadd.f32 %v1173, %v1233
  %v1258 = vadd.f32 %v1174, %v1253
  %v1259 = vxor.u32 %v1255, 2147483648
  %v1260 = vxor.u32 %v1256, 2147483648
  %v1261 = vxor.u32 %v1257, 2147483648
  %v1262 = vmul.f32 %v1259, 1.442695
  %v1263 = vpow.pop %v1262
  %v1264 = vmul.f32 %v1260, 1.442695
  %v1265 = vpow.pop %v1264
  %v1266 = vmul.f32 %v1261, 1.442695
  %v1267 = vpow.pop %v1266
  %v1268 = vadd.f32 %v1263, 1.0
  %v1269 = vadd.f32 %v1265, 1.0
  %v1270 = vadd.f32 %v1267, 1.0
  %v1271 = vrcp.pop %v1268
  %v1272 = vmul.f32 %v1268, %v1271
  %v1273 = vsub.f32 1.0, %v1272
  %v1274 = vmul.f32 %v1271, %v1273
  %v1275 = vadd.f32 %v1271, %v1274
  %vm1276 = vweird.f32 %v1268
  %vm1277 = vweird.f32 %v1271
  %vm1278 = vmor %vm1276, %vm1277
  %v1279 = vsel %vm1278, %v1271, %v1275
  %v1280 = vand.u32 2147483647, %v1268
  %vm1281 = vcmp.eq.f32.partialorder %v1280, 8.507059e+37
  %v1282 = vand.u32 %v1268, 2147483648
  %v1283 = vor.u32 1.1754944e-38, %v1282
  %v1284 = vsel %vm1281, %v1283, %v1279
  %v1285 = vmul.f32 1.0, %v1284
  %v1286 = vrcp.pop %v1269
  %v1287 = vmul.f32 %v1269, %v1286
  %v1288 = vsub.f32 1.0, %v1287
  %v1289 = vmul.f32 %v1286, %v1288
  %v1290 = vadd.f32 %v1286, %v1289
  %vm1291 = vweird.f32 %v1269
  %vm1292 = vweird.f32 %v1286
  %vm1293 = vmor %vm1291, %vm1292
  %v1294 = vsel %vm1293, %v1286, %v1290
  %v1295 = vand.u32 2147483647, %v1269
  %vm1296 = vcmp.eq.f32.partialorder %v1295, 8.507059e+37
  %v1297 = vand.u32 %v1269, 2147483648
  %v1298 = vor.u32 1.1754944e-38, %v1297
  %v1299 = vsel %vm1296, %v1298, %v1294
  %v1300 = vmul.f32 1.0, %v1299
  %v1301 = vrcp.pop %v1270
  %v1302 = vmul.f32 %v1270, %v1301
  %v1303 = vsub.f32 1.0, %v1302
  %v1304 = vmul.f32 %v1301, %v1303
  %v1305 = vadd.f32 %v1301, %v1304
  %vm1306 = vweird.f32 %v1270
  %vm1307 = vweird.f32 %v1301
  %vm1308 = vmor %vm1306, %vm1307
  %v1309 = vsel %vm1308, %v1301, %v1305
  %v1310 = vand.u32 2147483647, %v1270
  %vm1311 = vcmp.eq.f32.partialorder %v1310, 8.507059e+37
  %v1312 = vand.u32 %v1270, 2147483648
  %v1313 = vor.u32 1.1754944e-38, %v1312
  %v1314 = vsel %vm1311, %v1313, %v1309
  %v1315 = vmul.f32 1.0, %v1314
  %v1316 = vtanh.pop %v1258
  %v1317 = vmul.f32 %v1300, %v1165
  %v1318 = vmul.f32 %v1285, %v1316
  %v1319 = vadd.f32 %v1317, %v1318
  %v1320 = vtanh.pop %v1319
  %v1321 = vmul.f32 %v1315, %v1320
  %s1322 = scalar_lea.vmem %s4, 56
  %1323 = vst [vmem:[%s1322] sm:$0xff] %v1321
  %1324 = vst [vmem:[#allocation2] sm:$0xff] %v1321
  %1325 = vst [vmem:[#allocation3] sm:$0xff] %v1319
  %1326 = vst [vmem:[%s5] sm:$0xff] %v1321
  %1327 = vst [vmem:[%s6] sm:$0xff] %v1319
  // Predicated region
  $region22: #{poem_rnn_forward.4} parent=0 // pred_check
    _
  $region23: #{poem_rnn_forward.4} parent=0 // pred_check_branch
    %1329 = sbr.rel (0) target = $region25
  $region24: #{poem_rnn_forward.4} parent=0 // pred_region
    _
  $region25: #{poem_rnn_forward.4} parent=0 // pred_fallthru
    _
  // Predicated region
  $region26: #{poem_rnn_forward.4} parent=0 // pred_check
    _
  $region27: #{poem_rnn_forward.4} parent=0 // pred_check_branch
    %1331 = sbr.rel (0) target = $region29
  $region28: #{poem_rnn_forward.4} parent=0 // pred_region
    _
  $region29: #{poem_rnn_forward.4} parent=0 // pred_fallthru
    _
  // Predicated region
  $region30: #{poem_rnn_forward.4} parent=0 // pred_check
    _
  $region31: #{poem_rnn_forward.4} parent=0 // pred_check_branch
    %1333 = sbr.rel (0) target = $region33
  $region32: #{poem_rnn_forward.4} parent=0 // pred_region
    _
  $region33: #{poem_rnn_forward.4} parent=0 // pred_fallthru
    _
  // Predicated region
  $region34: #{poem_rnn_forward.4} parent=0 // pred_check
    _
  $region35: #{poem_rnn_forward.4} parent=0 // pred_check_branch
    %1335 = sbr.rel (0) target = $region37
  $region36: #{poem_rnn_forward.4} parent=0 // pred_region
    _
  $region37: #{poem_rnn_forward.4} parent=0 // pred_fallthru
    _
  // Predicated region
  $region38: #{poem_rnn_forward.4} parent=0 // pred_check
    _
  $region39: #{poem_rnn_forward.4} parent=0 // pred_check_branch
    %1337 = sbr.rel (0) target = $region41
  $region40: #{poem_rnn_forward.4} parent=0 // pred_region
    _
  $region41: #{poem_rnn_forward.4} parent=0 // pred_fallthru
    _
  // Predicated region
  $region42: #{poem_rnn_forward.4} parent=0 // pred_check
    _
  $region43: #{poem_rnn_forward.4} parent=0 // pred_check_branch
    %1339 = sbr.rel (0) target = $region45
  $region44: #{poem_rnn_forward.4} parent=0 // pred_region
    _
  $region45: #{poem_rnn_forward.4} parent=0 // pred_fallthru
    _

</llo_original>
